<compile_context>
chip_gen: v7x
topology: tpu7x:2x2x1
jax: 0.10.0
libtpu: 0.0.40
codegen_flags: <defaults>
</compile_context>

<pallas_src>
import jax
import jax.numpy as jnp
from jax.experimental import pallas as pl
from jax.experimental.pallas import tpu as pltpu


def _collapse_weights(w):
    """Collapse the 3x3 kernel into 4 parity-specific 2x2 kernels.

    For nearest-2x upsample followed by conv3x3(pad=1), output pixel
    (2r+a, 2c+b) only reads input pixels (r+u, c+v) with
    u in U(a), v in V(b), U(0)=V(0)=(-1,0), U(1)=V(1)=(0,+1), and the 3x3
    taps sum onto those 2x2 offsets:
      a=0: u=-1 <- ky=0,  u=0 <- ky=1+2      a=1: u=0 <- ky=0+1,  u=+1 <- ky=2
    (same for columns with b, kx).

    w: [Cout, Cin, 3, 3]  ->  [16 = (a,b,i,j), Cout, Cin]
    """
    r0 = jnp.stack([w[:, :, 0, :], w[:, :, 1, :] + w[:, :, 2, :]], axis=2)  # a=0
    r1 = jnp.stack([w[:, :, 0, :] + w[:, :, 1, :], w[:, :, 2, :]], axis=2)  # a=1
    wr = jnp.stack([r0, r1], axis=2)          # [Cout, Cin, 2(a), 2(i), 3(kx)]
    c0 = jnp.stack([wr[..., 0], wr[..., 1] + wr[..., 2]], axis=-1)          # b=0
    c1 = jnp.stack([wr[..., 0] + wr[..., 1], wr[..., 2]], axis=-1)          # b=1
    wc = jnp.stack([c0, c1], axis=-2)         # [Cout, Cin, 2(a), 2(i), 2(b), 2(j)]
    wc = jnp.transpose(wc, (2, 4, 3, 5, 0, 1))   # [a, b, i, j, Cout, Cin]
    Cout, Cin = w.shape[0], w.shape[1]
    return wc.reshape(16, Cout, Cin)


def upsample(x, w, b):
    """Nearest 2x upsample + Conv2d(C, C, kernel_size=3, padding=1).

    x: [B, C, H, W] (NCHW), w: [Cout, Cin, 3, 3], b: [Cout] -> [B, Cout, 2H, 2W]
    """
    B, Cin, H, W = x.shape
    Cout = w.shape[0]
    N = H * W
    pad_left = ((W + 1 + 127) // 128) * 128      # lane-aligned store of x into scratch
    pad_right = W + 1                            # covers shifts up to +(W+1)
    offs = ((-1, 0), (0, 1))                     # 2x2 tap offsets per parity

    wc = _collapse_weights(w).astype(x.dtype)    # [16, Cout, Cin]
    x_flat = x.reshape(B, Cin, N)                # spatial flattened onto lanes
    b_col = b.reshape(Cout, 1).astype(jnp.float32)

    def kernel(x_ref, wc_ref, b_ref, o_ref, xp_ref):
        # Zero-padded flat copy of this batch element's image: a halo of zeros on
        # each side makes every (u, v) in {-1,0,1}^2 spatial shift a static slice.
        xp_ref[...] = jnp.zeros_like(xp_ref)
        xp_ref[:, pad_left:pad_left + N] = x_ref[0]

        # Column-edge masks: a +/-1 column shift of the row-major flat image wraps
        # into the neighbouring row; those lanes must read as zero padding.
        col = jax.lax.broadcasted_iota(jnp.int32, (1, N), 1) % W
        not_first_col = col != 0            # needed for v = -1
        not_last_col = col != (W - 1)       # needed for v = +1

        def shifted(u, v):
            s0 = pad_left + u * W + v
            s = xp_ref[:, s0:s0 + N]        # [Cin, N], static lane slice
            if v == -1:
                s = jnp.where(not_first_col, s, jnp.zeros_like(s))
            elif v == 1:
                s = jnp.where(not_last_col, s, jnp.zeros_like(s))
            return s

        xs = {(u, v): shifted(u, v) for u in (-1, 0, 1) for v in (-1, 0, 1)}

        bias = b_ref[...]                   # [Cout, 1] f32
        for a in range(2):                  # output row parity
            for bb in range(2):             # output col parity
                acc = jnp.zeros((Cout, N), jnp.float32)
                for i in range(2):
                    for j in range(2):
                        w_tap = wc_ref[((a * 2 + bb) * 2 + i) * 2 + j]   # [Cout, Cin]
                        x_tap = xs[(offs[a][i], offs[bb][j])]            # [Cin, N]
                        acc = acc + jnp.dot(w_tap, x_tap,
                                            preferred_element_type=jnp.float32)
                o_ref[0, a * 2 + bb] = (acc + bias).astype(o_ref.dtype)

    bytes_io = (x_flat.size * x_flat.dtype.itemsize
                + wc.size * wc.dtype.itemsize
                + b_col.size * 4
                + B * 4 * Cout * N * x.dtype.itemsize)
    cost = pl.CostEstimate(flops=2 * B * 16 * Cout * Cin * N,
                           transcendentals=0,
                           bytes_accessed=bytes_io)

    grid_spec = pltpu.PrefetchScalarGridSpec(
        num_scalar_prefetch=0,
        grid=(B,),
        in_specs=[
            pl.BlockSpec((1, Cin, N), lambda bi: (bi, 0, 0)),
            pl.BlockSpec((16, Cout, Cin), lambda bi: (0, 0, 0)),
            pl.BlockSpec((Cout, 1), lambda bi: (0, 0)),
        ],
        out_specs=pl.BlockSpec((1, 4, Cout, N), lambda bi: (bi, 0, 0, 0)),
        scratch_shapes=[pltpu.VMEM((Cin, pad_left + N + pad_right), x.dtype)],
    )

    out = pl.pallas_call(
        kernel,
        out_shape=jax.ShapeDtypeStruct((B, 4, Cout, N), x.dtype),
        grid_spec=grid_spec,
        compiler_params=pltpu.CompilerParams(dimension_semantics=("parallel",)),
        cost_estimate=cost,
    )(x_flat, wc, b_col)

    # Interleave the 4 parities back into the (2H, 2W) image.
    # Pure layout plumbing (wrapper-side); all math happened inside the kernel.
    y = out.reshape(B, 2, 2, Cout, H, W)
    y = jnp.transpose(y, (0, 3, 4, 1, 5, 2))     # [B, Cout, H, a, W, b]
    return y.reshape(B, Cout, 2 * H, 2 * W)


if __name__ == "__main__":
    B, C, H, W = 2, 4, 16, 16
    key = jax.random.PRNGKey(0)
    kx, kw, kb = jax.random.split(key, 3)

    x = jax.random.normal(kx, (B, C, H, W), jnp.float32)
    fan_in = C * 3 * 3
    lim = 1.0 / (fan_in ** 0.5)        # PyTorch Conv2d default init bounds
    w = jax.random.uniform(kw, (C, C, 3, 3), jnp.float32, minval=-lim, maxval=lim)
    b = jax.random.uniform(kb, (C,), jnp.float32, minval=-lim, maxval=lim)

    y = upsample(x, w, b)
    y = jax.block_until_ready(y)

    # pure-JAX reference: F.interpolate(scale_factor=2, nearest) -> Conv2d(3, pad=1)
    x_up = jnp.repeat(jnp.repeat(x, 2, axis=2), 2, axis=3)
    ref = jax.lax.conv_general_dilated(
        x_up, w, window_strides=(1, 1), padding=((1, 1), (1, 1)),
        dimension_numbers=("NCHW", "OIHW", "NCHW")) + b.reshape(1, -1, 1, 1)

    assert y.shape == (B, C, 2 * H, 2 * W), y.shape
    assert jnp.allclose(y, ref, atol=1e-4, rtol=1e-4), \
        float(jnp.max(jnp.abs(y - ref)))

    print("KERNEL_OK")
</pallas_src>

<mosaic_0001>
module attributes {stable_mosaic.version = 11 : i64} {
  func.func @kernel(%arg0: i32, %arg1: memref<1x4x256xf32, #tpu.memory_space<vmem>>, %arg2: memref<16x4x4xf32, #tpu.memory_space<vmem>>, %arg3: memref<4x1xf32, #tpu.memory_space<vmem>>, %arg4: memref<1x4x4x256xf32, #tpu.memory_space<vmem>>, %arg5: memref<4x401xf32, #tpu.memory_space<vmem>>) attributes {dimension_semantics = [#tpu.dimension_semantics<parallel>], iteration_bounds = array<i64: 2>, scalar_prefetch = 0 : i64, scratch_operands = 1 : i64, tpu.core_type = #tpu.core_type<tc>, window_params = [{transform_indices = @transform_0, window_bounds = array<i64: 1, 4, 256>}, {pipeline_mode = #tpu.pipeline_mode<synchronous>, transform_indices = @transform_1, window_bounds = array<i64: 16, 4, 4>}, {pipeline_mode = #tpu.pipeline_mode<synchronous>, transform_indices = @transform_2, window_bounds = array<i64: 4, 1>}, {transform_indices = @transform_3, window_bounds = array<i64: 1, 4, 4, 256>}]} {
    %cst = arith.constant 0.000000e+00 : f32
    %0 = vector.broadcast %cst : f32 to vector<4x401xf32>
    %c0 = arith.constant 0 : index
    %c0_0 = arith.constant 0 : index
    %1 = vector.load %arg5[%c0, %c0_0] : memref<4x401xf32, #tpu.memory_space<vmem>>, vector<4x401xf32>
    tpu.vector_store %arg5[%c0, %c0_0], %0 {strides = array<i32>} : memref<4x401xf32, #tpu.memory_space<vmem>>, vector<4x401xf32>,
    %c0_1 = arith.constant 0 : index
    %c0_2 = arith.constant 0 : index
    %c0_3 = arith.constant 0 : index
    %2 = vector.load %arg1[%c0_1, %c0_2, %c0_3] : memref<1x4x256xf32, #tpu.memory_space<vmem>>, vector<1x4x256xf32>
    %3 = vector.shape_cast %2 : vector<1x4x256xf32> to vector<4x256xf32>
    %c0_4 = arith.constant 0 : index
    %c128 = arith.constant 128 : index
    %4 = vector.load %arg5[%c0_4, %c128] : memref<4x401xf32, #tpu.memory_space<vmem>>, vector<4x256xf32>
    tpu.vector_store %arg5[%c0_4, %c128], %3 {strides = array<i32>} : memref<4x401xf32, #tpu.memory_space<vmem>>, vector<4x256xf32>,
    %5 = tpu.iota {dimensions = array<i32: 1>} : vector<1x256xi32>
    %c16_i32 = arith.constant 16 : i32
    %c0_i32 = arith.constant 0 : i32
    %6 = arith.cmpi eq, %c16_i32, %c0_i32 : i32
    %c1_i32 = arith.constant 1 : i32
    %7 = arith.select %6, %c1_i32, %c16_i32 : i32
    %8 = vector.broadcast %7 : i32 to vector<1x256xi32>
    %9 = arith.remsi %5, %8 : vector<1x256xi32>
    %c0_i32_5 = arith.constant 0 : i32
    %10 = vector.broadcast %c0_i32_5 : i32 to vector<1x256xi32>
    %11 = arith.cmpi ne, %9, %10 : vector<1x256xi32>
    %c0_i32_6 = arith.constant 0 : i32
    %12 = vector.broadcast %c0_i32_6 : i32 to vector<1x256xi32>
    %13 = arith.cmpi slt, %9, %12 : vector<1x256xi32>
    %c0_i32_7 = arith.constant 0 : i32
    %14 = arith.cmpi slt, %7, %c0_i32_7 : i32
    %15 = vector.broadcast %14 : i1 to vector<1x256xi1>
    %16 = vector.broadcast %15 : vector<1x256xi1> to vector<1x256xi1>
    %17 = arith.xori %13, %16 : vector<1x256xi1>
    %18 = arith.andi %17, %11 : vector<1x256xi1>
    %19 = vector.broadcast %7 : i32 to vector<1x256xi32>
    %20 = arith.addi %9, %19 : vector<1x256xi32>
    %21 = arith.select %18, %20, %9 : vector<1x256xi1>, vector<1x256xi32>
    %c0_i32_8 = arith.constant 0 : i32
    %22 = vector.broadcast %c0_i32_8 : i32 to vector<1x256xi32>
    %23 = arith.cmpi ne, %21, %22 : vector<1x256xi32>
    %c15_i32 = arith.constant 15 : i32
    %24 = vector.broadcast %c15_i32 : i32 to vector<1x256xi32>
    %25 = arith.cmpi ne, %21, %24 : vector<1x256xi32>
    %c0_9 = arith.constant 0 : index
    %c111 = arith.constant 111 : index
    %26 = vector.load %arg5[%c0_9, %c111] : memref<4x401xf32, #tpu.memory_space<vmem>>, vector<4x256xf32>
    %cst_10 = arith.constant 0.000000e+00 : f32
    %27 = vector.broadcast %cst_10 : f32 to vector<4x256xf32>
    %28 = vector.shape_cast %23 : vector<1x256xi1> to vector<1x256xi1>
    %29 = vector.broadcast %28 : vector<1x256xi1> to vector<4x256xi1>
    %30 = arith.select %29, %26, %27 : vector<4x256xi1>, vector<4x256xf32>
    %c0_11 = arith.constant 0 : index
    %c112 = arith.constant 112 : index
    %31 = vector.load %arg5[%c0_11, %c112] : memref<4x401xf32, #tpu.memory_space<vmem>>, vector<4x256xf32>
    %c0_12 = arith.constant 0 : index
    %c113 = arith.constant 113 : index
    %32 = vector.load %arg5[%c0_12, %c113] : memref<4x401xf32, #tpu.memory_space<vmem>>, vector<4x256xf32>
    %cst_13 = arith.constant 0.000000e+00 : f32
    %33 = vector.broadcast %cst_13 : f32 to vector<4x256xf32>
    %34 = vector.shape_cast %25 : vector<1x256xi1> to vector<1x256xi1>
    %35 = vector.broadcast %34 : vector<1x256xi1> to vector<4x256xi1>
    %36 = arith.select %35, %32, %33 : vector<4x256xi1>, vector<4x256xf32>
    %c0_14 = arith.constant 0 : index
    %c127 = arith.constant 127 : index
    %37 = vector.load %arg5[%c0_14, %c127] : memref<4x401xf32, #tpu.memory_space<vmem>>, vector<4x256xf32>
    %cst_15 = arith.constant 0.000000e+00 : f32
    %38 = vector.broadcast %cst_15 : f32 to vector<4x256xf32>
    %39 = vector.shape_cast %23 : vector<1x256xi1> to vector<1x256xi1>
    %40 = vector.broadcast %39 : vector<1x256xi1> to vector<4x256xi1>
    %41 = arith.select %40, %37, %38 : vector<4x256xi1>, vector<4x256xf32>
    %c0_16 = arith.constant 0 : index
    %c128_17 = arith.constant 128 : index
    %42 = vector.load %arg5[%c0_16, %c128_17] : memref<4x401xf32, #tpu.memory_space<vmem>>, vector<4x256xf32>
    %c0_18 = arith.constant 0 : index
    %c129 = arith.constant 129 : index
    %43 = vector.load %arg5[%c0_18, %c129] : memref<4x401xf32, #tpu.memory_space<vmem>>, vector<4x256xf32>
    %cst_19 = arith.constant 0.000000e+00 : f32
    %44 = vector.broadcast %cst_19 : f32 to vector<4x256xf32>
    %45 = vector.shape_cast %25 : vector<1x256xi1> to vector<1x256xi1>
    %46 = vector.broadcast %45 : vector<1x256xi1> to vector<4x256xi1>
    %47 = arith.select %46, %43, %44 : vector<4x256xi1>, vector<4x256xf32>
    %c0_20 = arith.constant 0 : index
    %c143 = arith.constant 143 : index
    %48 = vector.load %arg5[%c0_20, %c143] : memref<4x401xf32, #tpu.memory_space<vmem>>, vector<4x256xf32>
    %cst_21 = arith.constant 0.000000e+00 : f32
    %49 = vector.broadcast %cst_21 : f32 to vector<4x256xf32>
    %50 = vector.shape_cast %23 : vector<1x256xi1> to vector<1x256xi1>
    %51 = vector.broadcast %50 : vector<1x256xi1> to vector<4x256xi1>
    %52 = arith.select %51, %48, %49 : vector<4x256xi1>, vector<4x256xf32>
    %c0_22 = arith.constant 0 : index
    %c144 = arith.constant 144 : index
    %53 = vector.load %arg5[%c0_22, %c144] : memref<4x401xf32, #tpu.memory_space<vmem>>, vector<4x256xf32>
    %c0_23 = arith.constant 0 : index
    %c145 = arith.constant 145 : index
    %54 = vector.load %arg5[%c0_23, %c145] : memref<4x401xf32, #tpu.memory_space<vmem>>, vector<4x256xf32>
    %cst_24 = arith.constant 0.000000e+00 : f32
    %55 = vector.broadcast %cst_24 : f32 to vector<4x256xf32>
    %56 = vector.shape_cast %25 : vector<1x256xi1> to vector<1x256xi1>
    %57 = vector.broadcast %56 : vector<1x256xi1> to vector<4x256xi1>
    %58 = arith.select %57, %54, %55 : vector<4x256xi1>, vector<4x256xf32>
    %c0_25 = arith.constant 0 : index
    %c0_26 = arith.constant 0 : index
    %59 = vector.load %arg3[%c0_25, %c0_26] : memref<4x1xf32, #tpu.memory_space<vmem>>, vector<4x1xf32>
    %cst_27 = arith.constant 0.000000e+00 : f32
    %60 = vector.broadcast %cst_27 : f32 to vector<4x256xf32>
    %c0_28 = arith.constant 0 : index
    %c0_29 = arith.constant 0 : index
    %c0_30 = arith.constant 0 : index
    %61 = vector.load %arg2[%c0_28, %c0_29, %c0_30] : memref<16x4x4xf32, #tpu.memory_space<vmem>>, vector<1x4x4xf32>
    %62 = vector.shape_cast %61 : vector<1x4x4xf32> to vector<4x4xf32>
    %cst_31 = arith.constant dense<0.000000e+00> : vector<4x256xf32>
    %63 = tpu.matmul %62, %30, %cst_31 {dimension_numbers = #tpu.dot_dimension_numbers<[1], [0], [0], [1], [0, 0, 1, 1], [], []>} : vector<4x4xf32>, vector<4x256xf32>, vector<4x256xf32> -> vector<4x256xf32>
    %64 = arith.addf %60, %63 : vector<4x256xf32>
    %c1 = arith.constant 1 : index
    %c0_32 = arith.constant 0 : index
    %c0_33 = arith.constant 0 : index
    %65 = vector.load %arg2[%c1, %c0_32, %c0_33] : memref<16x4x4xf32, #tpu.memory_space<vmem>>, vector<1x4x4xf32>
    %66 = vector.shape_cast %65 : vector<1x4x4xf32> to vector<4x4xf32>
    %cst_34 = arith.constant dense<0.000000e+00> : vector<4x256xf32>
    %67 = tpu.matmul %66, %31, %cst_34 {dimension_numbers = #tpu.dot_dimension_numbers<[1], [0], [0], [1], [0, 0, 1, 1], [], []>} : vector<4x4xf32>, vector<4x256xf32>, vector<4x256xf32> -> vector<4x256xf32>
    %68 = arith.addf %64, %67 : vector<4x256xf32>
    %c2 = arith.constant 2 : index
    %c0_35 = arith.constant 0 : index
    %c0_36 = arith.constant 0 : index
    %69 = vector.load %arg2[%c2, %c0_35, %c0_36] : memref<16x4x4xf32, #tpu.memory_space<vmem>>, vector<1x4x4xf32>
    %70 = vector.shape_cast %69 : vector<1x4x4xf32> to vector<4x4xf32>
    %cst_37 = arith.constant dense<0.000000e+00> : vector<4x256xf32>
    %71 = tpu.matmul %70, %41, %cst_37 {dimension_numbers = #tpu.dot_dimension_numbers<[1], [0], [0], [1], [0, 0, 1, 1], [], []>} : vector<4x4xf32>, vector<4x256xf32>, vector<4x256xf32> -> vector<4x256xf32>
    %72 = arith.addf %68, %71 : vector<4x256xf32>
    %c3 = arith.constant 3 : index
    %c0_38 = arith.constant 0 : index
    %c0_39 = arith.constant 0 : index
    %73 = vector.load %arg2[%c3, %c0_38, %c0_39] : memref<16x4x4xf32, #tpu.memory_space<vmem>>, vector<1x4x4xf32>
    %74 = vector.shape_cast %73 : vector<1x4x4xf32> to vector<4x4xf32>
    %cst_40 = arith.constant dense<0.000000e+00> : vector<4x256xf32>
    %75 = tpu.matmul %74, %42, %cst_40 {dimension_numbers = #tpu.dot_dimension_numbers<[1], [0], [0], [1], [0, 0, 1, 1], [], []>} : vector<4x4xf32>, vector<4x256xf32>, vector<4x256xf32> -> vector<4x256xf32>
    %76 = arith.addf %72, %75 : vector<4x256xf32>
    %77 = vector.broadcast %59 : vector<4x1xf32> to vector<4x256xf32>
    %78 = arith.addf %76, %77 : vector<4x256xf32>
    %c0_41 = arith.constant 0 : index
    %c0_42 = arith.constant 0 : index
    %c0_43 = arith.constant 0 : index
    %c0_44 = arith.constant 0 : index
    %79 = vector.load %arg4[%c0_41, %c0_42, %c0_43, %c0_44] : memref<1x4x4x256xf32, #tpu.memory_space<vmem>>, vector<1x1x4x256xf32>
    %80 = vector.shape_cast %79 : vector<1x1x4x256xf32> to vector<4x256xf32>
    %81 = vector.shape_cast %78 : vector<4x256xf32> to vector<1x1x4x256xf32>
    tpu.vector_store %arg4[%c0_41, %c0_42, %c0_43, %c0_44], %81 {strides = array<i32>} : memref<1x4x4x256xf32, #tpu.memory_space<vmem>>, vector<1x1x4x256xf32>,
    %cst_45 = arith.constant 0.000000e+00 : f32
    %82 = vector.broadcast %cst_45 : f32 to vector<4x256xf32>
    %c4 = arith.constant 4 : index
    %c0_46 = arith.constant 0 : index
    %c0_47 = arith.constant 0 : index
    %83 = vector.load %arg2[%c4, %c0_46, %c0_47] : memref<16x4x4xf32, #tpu.memory_space<vmem>>, vector<1x4x4xf32>
    %84 = vector.shape_cast %83 : vector<1x4x4xf32> to vector<4x4xf32>
    %cst_48 = arith.constant dense<0.000000e+00> : vector<4x256xf32>
    %85 = tpu.matmul %84, %31, %cst_48 {dimension_numbers = #tpu.dot_dimension_numbers<[1], [0], [0], [1], [0, 0, 1, 1], [], []>} : vector<4x4xf32>, vector<4x256xf32>, vector<4x256xf32> -> vector<4x256xf32>
    %86 = arith.addf %82, %85 : vector<4x256xf32>
    %c5 = arith.constant 5 : index
    %c0_49 = arith.constant 0 : index
    %c0_50 = arith.constant 0 : index
    %87 = vector.load %arg2[%c5, %c0_49, %c0_50] : memref<16x4x4xf32, #tpu.memory_space<vmem>>, vector<1x4x4xf32>
    %88 = vector.shape_cast %87 : vector<1x4x4xf32> to vector<4x4xf32>
    %cst_51 = arith.constant dense<0.000000e+00> : vector<4x256xf32>
    %89 = tpu.matmul %88, %36, %cst_51 {dimension_numbers = #tpu.dot_dimension_numbers<[1], [0], [0], [1], [0, 0, 1, 1], [], []>} : vector<4x4xf32>, vector<4x256xf32>, vector<4x256xf32> -> vector<4x256xf32>
    %90 = arith.addf %86, %89 : vector<4x256xf32>
    %c6 = arith.constant 6 : index
    %c0_52 = arith.constant 0 : index
    %c0_53 = arith.constant 0 : index
    %91 = vector.load %arg2[%c6, %c0_52, %c0_53] : memref<16x4x4xf32, #tpu.memory_space<vmem>>, vector<1x4x4xf32>
    %92 = vector.shape_cast %91 : vector<1x4x4xf32> to vector<4x4xf32>
    %cst_54 = arith.constant dense<0.000000e+00> : vector<4x256xf32>
    %93 = tpu.matmul %92, %42, %cst_54 {dimension_numbers = #tpu.dot_dimension_numbers<[1], [0], [0], [1], [0, 0, 1, 1], [], []>} : vector<4x4xf32>, vector<4x256xf32>, vector<4x256xf32> -> vector<4x256xf32>
    %94 = arith.addf %90, %93 : vector<4x256xf32>
    %c7 = arith.constant 7 : index
    %c0_55 = arith.constant 0 : index
    %c0_56 = arith.constant 0 : index
    %95 = vector.load %arg2[%c7, %c0_55, %c0_56] : memref<16x4x4xf32, #tpu.memory_space<vmem>>, vector<1x4x4xf32>
    %96 = vector.shape_cast %95 : vector<1x4x4xf32> to vector<4x4xf32>
    %cst_57 = arith.constant dense<0.000000e+00> : vector<4x256xf32>
    %97 = tpu.matmul %96, %47, %cst_57 {dimension_numbers = #tpu.dot_dimension_numbers<[1], [0], [0], [1], [0, 0, 1, 1], [], []>} : vector<4x4xf32>, vector<4x256xf32>, vector<4x256xf32> -> vector<4x256xf32>
    %98 = arith.addf %94, %97 : vector<4x256xf32>
    %99 = vector.broadcast %59 : vector<4x1xf32> to vector<4x256xf32>
    %100 = arith.addf %98, %99 : vector<4x256xf32>
    %c0_58 = arith.constant 0 : index
    %c1_59 = arith.constant 1 : index
    %c0_60 = arith.constant 0 : index
    %c0_61 = arith.constant 0 : index
    %101 = vector.load %arg4[%c0_58, %c1_59, %c0_60, %c0_61] : memref<1x4x4x256xf32, #tpu.memory_space<vmem>>, vector<1x1x4x256xf32>
    %102 = vector.shape_cast %101 : vector<1x1x4x256xf32> to vector<4x256xf32>
    %103 = vector.shape_cast %100 : vector<4x256xf32> to vector<1x1x4x256xf32>
    tpu.vector_store %arg4[%c0_58, %c1_59, %c0_60, %c0_61], %103 {strides = array<i32>} : memref<1x4x4x256xf32, #tpu.memory_space<vmem>>, vector<1x1x4x256xf32>,
    %cst_62 = arith.constant 0.000000e+00 : f32
    %104 = vector.broadcast %cst_62 : f32 to vector<4x256xf32>
    %c8 = arith.constant 8 : index
    %c0_63 = arith.constant 0 : index
    %c0_64 = arith.constant 0 : index
    %105 = vector.load %arg2[%c8, %c0_63, %c0_64] : memref<16x4x4xf32, #tpu.memory_space<vmem>>, vector<1x4x4xf32>
    %106 = vector.shape_cast %105 : vector<1x4x4xf32> to vector<4x4xf32>
    %cst_65 = arith.constant dense<0.000000e+00> : vector<4x256xf32>
    %107 = tpu.matmul %106, %41, %cst_65 {dimension_numbers = #tpu.dot_dimension_numbers<[1], [0], [0], [1], [0, 0, 1, 1], [], []>} : vector<4x4xf32>, vector<4x256xf32>, vector<4x256xf32> -> vector<4x256xf32>
    %108 = arith.addf %104, %107 : vector<4x256xf32>
    %c9 = arith.constant 9 : index
    %c0_66 = arith.constant 0 : index
    %c0_67 = arith.constant 0 : index
    %109 = vector.load %arg2[%c9, %c0_66, %c0_67] : memref<16x4x4xf32, #tpu.memory_space<vmem>>, vector<1x4x4xf32>
    %110 = vector.shape_cast %109 : vector<1x4x4xf32> to vector<4x4xf32>
    %cst_68 = arith.constant dense<0.000000e+00> : vector<4x256xf32>
    %111 = tpu.matmul %110, %42, %cst_68 {dimension_numbers = #tpu.dot_dimension_numbers<[1], [0], [0], [1], [0, 0, 1, 1], [], []>} : vector<4x4xf32>, vector<4x256xf32>, vector<4x256xf32> -> vector<4x256xf32>
    %112 = arith.addf %108, %111 : vector<4x256xf32>
    %c10 = arith.constant 10 : index
    %c0_69 = arith.constant 0 : index
    %c0_70 = arith.constant 0 : index
    %113 = vector.load %arg2[%c10, %c0_69, %c0_70] : memref<16x4x4xf32, #tpu.memory_space<vmem>>, vector<1x4x4xf32>
    %114 = vector.shape_cast %113 : vector<1x4x4xf32> to vector<4x4xf32>
    %cst_71 = arith.constant dense<0.000000e+00> : vector<4x256xf32>
    %115 = tpu.matmul %114, %52, %cst_71 {dimension_numbers = #tpu.dot_dimension_numbers<[1], [0], [0], [1], [0, 0, 1, 1], [], []>} : vector<4x4xf32>, vector<4x256xf32>, vector<4x256xf32> -> vector<4x256xf32>
    %116 = arith.addf %112, %115 : vector<4x256xf32>
    %c11 = arith.constant 11 : index
    %c0_72 = arith.constant 0 : index
    %c0_73 = arith.constant 0 : index
    %117 = vector.load %arg2[%c11, %c0_72, %c0_73] : memref<16x4x4xf32, #tpu.memory_space<vmem>>, vector<1x4x4xf32>
    %118 = vector.shape_cast %117 : vector<1x4x4xf32> to vector<4x4xf32>
    %cst_74 = arith.constant dense<0.000000e+00> : vector<4x256xf32>
    %119 = tpu.matmul %118, %53, %cst_74 {dimension_numbers = #tpu.dot_dimension_numbers<[1], [0], [0], [1], [0, 0, 1, 1], [], []>} : vector<4x4xf32>, vector<4x256xf32>, vector<4x256xf32> -> vector<4x256xf32>
    %120 = arith.addf %116, %119 : vector<4x256xf32>
    %121 = vector.broadcast %59 : vector<4x1xf32> to vector<4x256xf32>
    %122 = arith.addf %120, %121 : vector<4x256xf32>
    %c0_75 = arith.constant 0 : index
    %c2_76 = arith.constant 2 : index
    %c0_77 = arith.constant 0 : index
    %c0_78 = arith.constant 0 : index
    %123 = vector.load %arg4[%c0_75, %c2_76, %c0_77, %c0_78] : memref<1x4x4x256xf32, #tpu.memory_space<vmem>>, vector<1x1x4x256xf32>
    %124 = vector.shape_cast %123 : vector<1x1x4x256xf32> to vector<4x256xf32>
    %125 = vector.shape_cast %122 : vector<4x256xf32> to vector<1x1x4x256xf32>
    tpu.vector_store %arg4[%c0_75, %c2_76, %c0_77, %c0_78], %125 {strides = array<i32>} : memref<1x4x4x256xf32, #tpu.memory_space<vmem>>, vector<1x1x4x256xf32>,
    %cst_79 = arith.constant 0.000000e+00 : f32
    %126 = vector.broadcast %cst_79 : f32 to vector<4x256xf32>
    %c12 = arith.constant 12 : index
    %c0_80 = arith.constant 0 : index
    %c0_81 = arith.constant 0 : index
    %127 = vector.load %arg2[%c12, %c0_80, %c0_81] : memref<16x4x4xf32, #tpu.memory_space<vmem>>, vector<1x4x4xf32>
    %128 = vector.shape_cast %127 : vector<1x4x4xf32> to vector<4x4xf32>
    %cst_82 = arith.constant dense<0.000000e+00> : vector<4x256xf32>
    %129 = tpu.matmul %128, %42, %cst_82 {dimension_numbers = #tpu.dot_dimension_numbers<[1], [0], [0], [1], [0, 0, 1, 1], [], []>} : vector<4x4xf32>, vector<4x256xf32>, vector<4x256xf32> -> vector<4x256xf32>
    %130 = arith.addf %126, %129 : vector<4x256xf32>
    %c13 = arith.constant 13 : index
    %c0_83 = arith.constant 0 : index
    %c0_84 = arith.constant 0 : index
    %131 = vector.load %arg2[%c13, %c0_83, %c0_84] : memref<16x4x4xf32, #tpu.memory_space<vmem>>, vector<1x4x4xf32>
    %132 = vector.shape_cast %131 : vector<1x4x4xf32> to vector<4x4xf32>
    %cst_85 = arith.constant dense<0.000000e+00> : vector<4x256xf32>
    %133 = tpu.matmul %132, %47, %cst_85 {dimension_numbers = #tpu.dot_dimension_numbers<[1], [0], [0], [1], [0, 0, 1, 1], [], []>} : vector<4x4xf32>, vector<4x256xf32>, vector<4x256xf32> -> vector<4x256xf32>
    %134 = arith.addf %130, %133 : vector<4x256xf32>
    %c14 = arith.constant 14 : index
    %c0_86 = arith.constant 0 : index
    %c0_87 = arith.constant 0 : index
    %135 = vector.load %arg2[%c14, %c0_86, %c0_87] : memref<16x4x4xf32, #tpu.memory_space<vmem>>, vector<1x4x4xf32>
    %136 = vector.shape_cast %135 : vector<1x4x4xf32> to vector<4x4xf32>
    %cst_88 = arith.constant dense<0.000000e+00> : vector<4x256xf32>
    %137 = tpu.matmul %136, %53, %cst_88 {dimension_numbers = #tpu.dot_dimension_numbers<[1], [0], [0], [1], [0, 0, 1, 1], [], []>} : vector<4x4xf32>, vector<4x256xf32>, vector<4x256xf32> -> vector<4x256xf32>
    %138 = arith.addf %134, %137 : vector<4x256xf32>
    %c15 = arith.constant 15 : index
    %c0_89 = arith.constant 0 : index
    %c0_90 = arith.constant 0 : index
    %139 = vector.load %arg2[%c15, %c0_89, %c0_90] : memref<16x4x4xf32, #tpu.memory_space<vmem>>, vector<1x4x4xf32>
    %140 = vector.shape_cast %139 : vector<1x4x4xf32> to vector<4x4xf32>
    %cst_91 = arith.constant dense<0.000000e+00> : vector<4x256xf32>
    %141 = tpu.matmul %140, %58, %cst_91 {dimension_numbers = #tpu.dot_dimension_numbers<[1], [0], [0], [1], [0, 0, 1, 1], [], []>} : vector<4x4xf32>, vector<4x256xf32>, vector<4x256xf32> -> vector<4x256xf32>
    %142 = arith.addf %138, %141 : vector<4x256xf32>
    %143 = vector.broadcast %59 : vector<4x1xf32> to vector<4x256xf32>
    %144 = arith.addf %142, %143 : vector<4x256xf32>
    %c0_92 = arith.constant 0 : index
    %c3_93 = arith.constant 3 : index
    %c0_94 = arith.constant 0 : index
    %c0_95 = arith.constant 0 : index
    %145 = vector.load %arg4[%c0_92, %c3_93, %c0_94, %c0_95] : memref<1x4x4x256xf32, #tpu.memory_space<vmem>>, vector<1x1x4x256xf32>
    %146 = vector.shape_cast %145 : vector<1x1x4x256xf32> to vector<4x256xf32>
    %147 = vector.shape_cast %144 : vector<4x256xf32> to vector<1x1x4x256xf32>
    tpu.vector_store %arg4[%c0_92, %c3_93, %c0_94, %c0_95], %147 {strides = array<i32>} : memref<1x4x4x256xf32, #tpu.memory_space<vmem>>, vector<1x1x4x256xf32>,
    return
  }
  func.func @transform_0(%arg0: i32) -> (i32, i32, i32) {
    %c0_i32 = arith.constant 0 : i32
    %c0_i32_0 = arith.constant 0 : i32
    %c0_i32_1 = arith.constant 0 : i32
    return %arg0, %c0_i32, %c0_i32_0 : i32, i32, i32
  }
  func.func @transform_1(%arg0: i32) -> (i32, i32, i32) {
    %c0_i32 = arith.constant 0 : i32
    %c0_i32_0 = arith.constant 0 : i32
    %c0_i32_1 = arith.constant 0 : i32
    %c0_i32_2 = arith.constant 0 : i32
    return %c0_i32, %c0_i32_0, %c0_i32_1 : i32, i32, i32
  }
  func.func @transform_2(%arg0: i32) -> (i32, i32) {
    %c0_i32 = arith.constant 0 : i32
    %c0_i32_0 = arith.constant 0 : i32
    %c0_i32_1 = arith.constant 0 : i32
    return %c0_i32, %c0_i32_0 : i32, i32
  }
  func.func @transform_3(%arg0: i32) -> (i32, i32, i32, i32) {
    %c0_i32 = arith.constant 0 : i32
    %c0_i32_0 = arith.constant 0 : i32
    %c0_i32_1 = arith.constant 0 : i32
    %c0_i32_2 = arith.constant 0 : i32
    return %arg0, %c0_i32, %c0_i32_0, %c0_i32_1 : i32, i32, i32, i32
  }
}

</mosaic_0001>

<llo_original>
// kernel: tpu_custom_call.1
$region0: #{tpu_custom_call.1}
  #allocation0 [shape = 'u32[]', space=smem, size = 0x4, offset = 0x4, fixed_abs, tag = 'smem constant byte address 0x4 - core index']
  #allocation1 [shape = 'u32[144,128]{1,0:T(1,128)}', space=vmem, size = 0x12000, scoped, tag = 'internal scratch']
  #allocation2 [shape = 'f32[4,401]{1,0:T(4,128)}', space=vmem, size = 0x2000, scoped, tag = 'scratch operand']
  %s0 = inlined_call_operand.vmem [shape: f32[2,4,256], index: 0, kind: input, shape index: {}]
  %s1 = inlined_call_operand.vmem [shape: f32[16,4,4], index: 1, kind: input, shape index: {}]
  %s2 = inlined_call_operand.vmem [shape: f32[4,1], index: 2, kind: input, shape index: {}]
  %s3 = inlined_call_operand.hbm [shape: f32[2,4,4,256], index: 3, kind: output, shape index: {}]
  %s4 = sld [smem:[#allocation0]]
  $region45: #{tpu_custom_call.1} parent=0
    _
  %s6 = ssub.s32 1, %s4
  %s7 = scalar_select 0, %s6, %s4
  $region1: #{tpu_custom_call.1} parent=0
    #allocation3 [shape = 'u8[32768]{0}', space=vmem, size = 0x8000, scoped, tag = 'output window, operand 0']
    #allocation4 [shape = 's32[2]{0}', space=sflag, size = 0x8, scoped, tag = 'scoped memory for tpu_custom_call.1']
    %8 = vsyncpa [#allocation4], 0
    %s9 = scalar_lea.sflag [#allocation4], 1
    %10 = vsyncpa %s9, 0
    loop: start=0, step=1, limit=4
    $region2: #{tpu_custom_call.1} parent=1 // loop_pre_header
      _
    $region3: #{tpu_custom_call.1} parent=1 // loop_header
      %s12 = sphi 0, %s16
      %p13 = scmp.ge.s32.totalorder %s12, 4
      %s22 = sphi 0, %s24
      %s25 = sphi 0, %s22
      %s26 = sphi 0, %s25
      %s42 = sphi 0, %s26
      %s46 = sphi 0, %s46
      %s48 = sphi 0, %s46
      %s49 = sphi 0, %s48
      %s63 = sphi 0, %s49
      %s67 = sphi 0, %s67
      %s69 = sphi 0, %s67
      %s70 = sphi 0, %s69
      %s84 = sphi 0, %s70
      %s90 = sphi 0, %s92
      %s93 = sphi 0, %s90
      %s94 = sphi 0, %s93
      %s110 = sphi 0, %s94
    $region4: #{tpu_custom_call.1} parent=1 // loop_header_branch
      %15 = sbr.rel (%p13) target = $region8
    $region5: #{tpu_custom_call.1} parent=1 // loop_body
      %s17 = ssub.s32 %s12, 1
      %s18 = ssub.s32 %s12, 2
      %s19 = sadd.s32 %s12, 1
      %s20 = ssub.s32 %s12, %s19
      %p21 = scmp.eq.s32.totalorder %s20, 0
      %s23 = sadd.s32 %s22, 1
      %s24 = scalar_select %p21, %s22, %s23
      %p27 = pneg %p21
      %p28 = scmp.eq.s32.totalorder %s12, 1
      %p29 = por %p27, %p28
      %p30 = scmp.ne.s32.totalorder %s22, %s25
      %p31 = scmp.eq.s32.totalorder %s12, 0
      %p32 = por %p30, %p31
      %p33 = scmp.ne.s32.totalorder %s22, %s25
      %p34 = scmp.eq.s32.totalorder %s17, 1
      %p35 = por %p33, %p34
      %p36 = scmp.ne.s32.totalorder %s25, %s26
      %p37 = scmp.eq.s32.totalorder %s17, 0
      %p38 = por %p36, %p37
      %p39 = scmp.ne.s32.totalorder %s25, %s26
      %p40 = scmp.eq.s32.totalorder %s18, 1
      %p41 = por %p39, %p40
      %p43 = scmp.ne.s32.totalorder %s26, %s42
      %p44 = scmp.eq.s32.totalorder %s18, 0
      %p45 = por %p43, %p44
      %s47 = sadd.s32 %s46, 1
      %p50 = scmp.eq.s32.totalorder %s12, 1
      %p51 = scmp.ne.s32.totalorder %s46, %s48
      %p52 = scmp.eq.s32.totalorder %s12, 0
      %p53 = por %p51, %p52
      %p54 = scmp.ne.s32.totalorder %s46, %s48
      %p55 = scmp.eq.s32.totalorder %s17, 1
      %p56 = por %p54, %p55
      %p57 = scmp.ne.s32.totalorder %s48, %s49
      %p58 = scmp.eq.s32.totalorder %s17, 0
      %p59 = por %p57, %p58
      %p60 = scmp.ne.s32.totalorder %s48, %s49
      %p61 = scmp.eq.s32.totalorder %s18, 1
      %p62 = por %p60, %p61
      %p64 = scmp.ne.s32.totalorder %s49, %s63
      %p65 = scmp.eq.s32.totalorder %s18, 0
      %p66 = por %p64, %p65
      %s68 = sadd.s32 %s67, 1
      %p71 = scmp.eq.s32.totalorder %s12, 1
      %p72 = scmp.ne.s32.totalorder %s67, %s69
      %p73 = scmp.eq.s32.totalorder %s12, 0
      %p74 = por %p72, %p73
      %p75 = scmp.ne.s32.totalorder %s67, %s69
      %p76 = scmp.eq.s32.totalorder %s17, 1
      %p77 = por %p75, %p76
      %p78 = scmp.ne.s32.totalorder %s69, %s70
      %p79 = scmp.eq.s32.totalorder %s17, 0
      %p80 = por %p78, %p79
      %p81 = scmp.ne.s32.totalorder %s69, %s70
      %p82 = scmp.eq.s32.totalorder %s18, 1
      %p83 = por %p81, %p82
      %p85 = scmp.ne.s32.totalorder %s70, %s84
      %p86 = scmp.eq.s32.totalorder %s18, 0
      %p87 = por %p85, %p86
      %s88 = ssub.s32 %s12, %s19
      %p89 = scmp.eq.s32.totalorder %s88, 0
      %s91 = sadd.s32 %s90, 1
      %s92 = scalar_select %p89, %s90, %s91
      %p95 = pneg %p89
      %p96 = scmp.eq.s32.totalorder %s12, 1
      %p97 = por %p95, %p96
      %p98 = scmp.ne.s32.totalorder %s90, %s93
      %p99 = scmp.eq.s32.totalorder %s12, 0
      %p100 = por %p98, %p99
      %p101 = scmp.ne.s32.totalorder %s90, %s93
      %p102 = scmp.eq.s32.totalorder %s17, 1
      %p103 = por %p101, %p102
      %p104 = scmp.ne.s32.totalorder %s93, %s94
      %p105 = scmp.eq.s32.totalorder %s17, 0
      %p106 = por %p104, %p105
      %p107 = scmp.ne.s32.totalorder %s93, %s94
      %p108 = scmp.eq.s32.totalorder %s18, 1
      %p109 = por %p107, %p108
      %p111 = scmp.ne.s32.totalorder %s94, %s110
      %p112 = scmp.eq.s32.totalorder %s18, 0
      %p113 = por %p111, %p112
      %p114 = scmp.le.s32.totalorder 1, %s12
      %p115 = scmp.lt.s32.totalorder %s12, 3
      %p116 = pnand %p114, %p115
      %p117 = pneg %p116
      // Predicated region
      $region9: #{tpu_custom_call.1} parent=5 // pred_check
        _
      $region10: #{tpu_custom_call.1} parent=5 // pred_check_branch
        %119 = sbr.rel (%p116) target = $region12
      $region11: #{tpu_custom_call.1} parent=5 // pred_region
        %s120 = ssub.s32 %s12, 1
        // Predicated region
        $region13: #{tpu_custom_call.1} parent=11 // pred_check
          %p121 = pneg %p59
        $region14: #{tpu_custom_call.1} parent=11 // pred_check_branch
          %123 = sbr.rel (%p121) target = $region16
        $region15: #{tpu_custom_call.1} parent=11 // pred_region
          _
        $region16: #{tpu_custom_call.1} parent=11 // pred_fallthru
          _
        // Predicated region
        $region17: #{tpu_custom_call.1} parent=11 // pred_check
          %p124 = pneg %p80
        $region18: #{tpu_custom_call.1} parent=11 // pred_check_branch
          %126 = sbr.rel (%p124) target = $region20
        $region19: #{tpu_custom_call.1} parent=11 // pred_region
          _
        $region20: #{tpu_custom_call.1} parent=11 // pred_fallthru
          _
      $region12: #{tpu_custom_call.1} parent=5 // pred_fallthru
        _
      %p127 = scmp.lt.s32.totalorder %s12, 2
      // Predicated region
      $region21: #{tpu_custom_call.1} parent=5 // pred_check
        %p128 = pneg %p127
      $region22: #{tpu_custom_call.1} parent=5 // pred_check_branch
        %130 = sbr.rel (%p128) target = $region24
      $region23: #{tpu_custom_call.1} parent=5 // pred_region
        // Predicated region
        $region25: #{tpu_custom_call.1} parent=23 // pred_check
          %p131 = pneg %p32
        $region26: #{tpu_custom_call.1} parent=23 // pred_check_branch
          %133 = sbr.rel (%p131) target = $region28
        $region27: #{tpu_custom_call.1} parent=23 // pred_region
          %p134 = scmp.lt.s32.totalorder %s12, 1
          %s135 = scalar_select %p134, %s12, 1
          %s136 = smul.addr %s135, 2
          %s137 = smul.addr %s136, 4
          %s138 = scalar_lea.vmem %s0, %s137
        $region28: #{tpu_custom_call.1} parent=23 // pred_fallthru
          _
      $region24: #{tpu_custom_call.1} parent=5 // pred_fallthru
        _
      %p139 = scmp.le.s32.totalorder 1, %s12
      %p140 = scmp.lt.s32.totalorder %s12, 3
      %p141 = pnand %p139, %p140
      %p142 = pneg %p141
      // Predicated region
      $region29: #{tpu_custom_call.1} parent=5 // pred_check
        _
      $region30: #{tpu_custom_call.1} parent=5 // pred_check_branch
        %144 = sbr.rel (%p141) target = $region32
      $region31: #{tpu_custom_call.1} parent=5 // pred_region
        %s145 = ssub.s32 %s12, 1
        %p146 = scmp.lt.s32.totalorder %s17, 1
        %s147 = scalar_select %p146, %s17, 1
        %s148 = smul.addr %s147, 2
        %s149 = smul.addr %s148, 4
        %s150 = scalar_lea.vmem %s0, %s149
        %p151 = pneg %p38
        %p152 = pneg %p35
        %p153 = pneg %p59
        %p154 = pneg %p56
        %p155 = pneg %p80
        %p156 = pneg %p77
        %p157 = pneg %p106
        %p158 = pneg %p103
        %s159 = sand.u32 %s93, 1
        %s160 = scalar_lea.sflag [#allocation4], %s159
        %s161 = sand.u32 %s93, 1
        %s162 = smul.addr %s161, 32
        %s163 = scalar_lea.vmem [#allocation3], %s162
        %p164 = scmp.lt.s32.totalorder %s17, 1
        %s165 = scalar_select %p164, %s17, 1
        %s166 = smul.addr %s165, 2
        %s167 = smul.addr %s166, 4
        %s168 = scalar_lea.vmem %s0, %s167
        %169 = vst [vmem:[#allocation2] sm:$0xff] 0.0
        %vm170 = vcmask 1043456
        %vm171 = vcmask 138244
        %vm172 = vmor %vm171, %vm170
        %173 = vst.msk [vmem:[#allocation2 + $0x8] sm:$0xff] %vm172, 0.0
        %v174 = vld [vmem:[%s168] sm:$0xff]
        %175 = vst [vmem:[#allocation2 + $0x4] sm:$0xff] %v174
        %v176 = vlaneseq
        %v177 = vand.u32 %v176, 127
        %v178 = vadd.s32 %v177, 128
        %vm179 = vcmp.lt.s32.totalorder %v177, 0
        %v180 = vsub.s32 0, %v177
        %v181 = vsel %vm179, %v180, %v177
        %v182 = vshrl.u32 %v181, 4
        %v183 = vand.u32 %v181, 15
        %v184 = vsub.s32 0, %v183
        %v185 = vsel %vm179, %v184, %v183
        %vm186 = vcmp.lt.s32.totalorder %v178, 0
        %v187 = vsub.s32 0, %v178
        %v188 = vsel %vm186, %v187, %v178
        %v189 = vshrl.u32 %v188, 4
        %v190 = vand.u32 %v188, 15
        %v191 = vsub.s32 0, %v190
        %v192 = vsel %vm186, %v191, %v190
        %vm193 = vcmp.ne.s32.totalorder %v185, 0
        %vm194 = vcmp.ne.s32.totalorder %v192, 0
        %vm195 = vcmp.lt.s32.totalorder %v185, 0
        %vm196 = vcmp.lt.s32.totalorder %v192, 0
        %vm197 = vmand %vm195, %vm193
        %vm198 = vmand %vm196, %vm194
        %v199 = vadd.s32 %v185, 16
        %v200 = vadd.s32 %v192, 16
        %v201 = vsel %vm197, %v199, %v185
        %v202 = vsel %vm198, %v200, %v192
        %vm203 = vcmp.ne.s32.totalorder %v201, 0
        %vm204 = vcmp.ne.s32.totalorder %v202, 0
        %vm205 = vcmp.ne.s32.totalorder %v201, 15
        %vm206 = vcmp.ne.s32.totalorder %v202, 15
        %v207 = vld [vmem:[#allocation2] sm:$0xff]
        %v208 = vld [vmem:[#allocation2 + $0x8] sm:$0xf]
        %v209 = vsel %vm203, 1, 0
        %v210 = vsel %vm204, 1, 0
        %vm211 = vcmp.eq.s32.totalorder %v209, 1
        %vm212 = vcmp.eq.s32.totalorder %v210, 1
        %v215 = vcombine.high %v207, %v207
        %216 = vrot.lane.b32.xlu0 %v207, 17
        %v217 = vpop.permute.xlu0 %216
        %218 = vrot.lane.b32.xlu0 %v215, 17
        %v219 = vpop.permute.xlu0 %218
        %220 = vrot.lane.b32.xlu0 %v208, 17
        %v221 = vpop.permute.xlu0 %220
        %vm222 = vcmask 138240
        %v223 = vsel %vm222, %v217, %v219
        %v224 = vsel %vm222, %v219, %v221
        %v227 = vsel %vm211, %v223, 0.0
        %v228 = vsel %vm212, %v224, 0.0
        %v229 = vsel %vm205, 1, 0
        %v230 = vsel %vm206, 1, 0
        %vm231 = vcmp.eq.s32.totalorder %v229, 1
        %vm232 = vcmp.eq.s32.totalorder %v230, 1
        %233 = vrot.lane.b32.xlu0 %v207, 15
        %v234 = vpop.permute.xlu0 %233
        %235 = vrot.lane.b32.xlu0 %v215, 15
        %v236 = vpop.permute.xlu0 %235
        %237 = vrot.lane.b32.xlu0 %v208, 15
        %v238 = vpop.permute.xlu0 %237
        %vm239 = vcmask 121856
        %v240 = vsel %vm239, %v234, %v236
        %v241 = vsel %vm239, %v236, %v238
        %v244 = vsel %vm231, %v240, 0.0
        %v245 = vsel %vm232, %v241, 0.0
        %246 = vrot.lane.b32.xlu0 %v207, 1
        %v247 = vpop.permute.xlu0 %246
        %248 = vrot.lane.b32.xlu0 %v215, 1
        %v249 = vpop.permute.xlu0 %248
        %250 = vrot.lane.b32.xlu0 %v208, 1
        %v251 = vpop.permute.xlu0 %250
        %vm252 = vcmask 7168
        %v253 = vsel %vm252, %v247, %v249
        %v254 = vsel %vm252, %v249, %v251
        %v257 = vsel %vm211, %v253, 0.0
        %v258 = vsel %vm212, %v254, 0.0
        %v259 = vld [vmem:[#allocation2 + $0x4] sm:$0xff]
        %v260 = vld [vmem:[#allocation2 + $0xc] sm:$0xf]
        %v263 = vcombine.high %v259, %v259
        %264 = vrot.lane.b32.xlu0 %v259, 127
        %v265 = vpop.permute.xlu0 %264
        %266 = vrot.lane.b32.xlu0 %v263, 127
        %v267 = vpop.permute.xlu0 %266
        %268 = vrot.lane.b32.xlu0 %v260, 127
        %v269 = vpop.permute.xlu0 %268
        %vm270 = vcmask 1039360
        %v271 = vsel %vm270, %v265, %v267
        %v272 = vsel %vm270, %v267, %v269
        %v275 = vsel %vm231, %v271, 0.0
        %v276 = vsel %vm232, %v272, 0.0
        %277 = vrot.lane.b32.xlu0 %v259, 113
        %v278 = vpop.permute.xlu0 %277
        %279 = vrot.lane.b32.xlu0 %v263, 113
        %v280 = vpop.permute.xlu0 %279
        %281 = vrot.lane.b32.xlu0 %v260, 113
        %v282 = vpop.permute.xlu0 %281
        %vm283 = vcmask 924672
        %v284 = vsel %vm283, %v278, %v280
        %v285 = vsel %vm283, %v280, %v282
        %v288 = vsel %vm211, %v284, 0.0
        %v289 = vsel %vm212, %v285, 0.0
        %290 = vrot.lane.b32.xlu0 %v259, 111
        %v291 = vpop.permute.xlu0 %290
        %292 = vrot.lane.b32.xlu0 %v263, 111
        %v293 = vpop.permute.xlu0 %292
        %294 = vrot.lane.b32.xlu0 %v260, 111
        %v295 = vpop.permute.xlu0 %294
        %vm296 = vcmask 908288
        %v297 = vsel %vm296, %v291, %v293
        %v298 = vsel %vm296, %v293, %v295
        %v301 = vsel %vm231, %v297, 0.0
        %v302 = vsel %vm232, %v298, 0.0
        %v303 = vld [vmem:[%s2] sm:$0xf]
        %v304 = vld [vmem:[%s1] sm:$0xf]
        %s305 = scalar_lea.vmem %s1, 4
        %v306 = vld [vmem:[%s305] sm:$0xf]
        %307 = vrot.lane.b32.xlu0 %v207, 16
        %v308 = vpop.permute.xlu0 %307
        %309 = vrot.lane.b32.xlu0 %v215, 16
        %v310 = vpop.permute.xlu0 %309
        %311 = vrot.lane.b32.xlu0 %v208, 16
        %v312 = vpop.permute.xlu0 %311
        %vm313 = vcmask 130048
        %v314 = vsel %vm313, %v308, %v310
        %v315 = vsel %vm313, %v310, %v312
        %vm316 = vcmask 31744
        %v318 = vsel %vm316, %v306, 0
        %v320 = vsel %vm170, %v314, 0
        %v322 = vsel %vm170, %v315, 0
        %324 = vmatprep.subr.mxu0 %v322
        %325 = vmatpush1.msra.mxu0 %v320
        %326 = vmatprep.subr.mxu0 0.0
        %327 = vmatpush1.msra.mxu0 0.0
        %328 = vmatprep.subr.mxu0 0.0
        %329 = vmatpush1.msra.mxu0 0.0
        %330 = vmatprep.subr.mxu0 0.0
        %331 = vmatpush1.msra.mxu0 0.0
        %332 = vmatprep.subr.mxu0 0.0
        %333 = vmatpush1.msra.mxu0 0.0
        %334 = vmatprep.subr.mxu0 0.0
        %335 = vmatpush1.msra.mxu0 0.0
        %336 = vmatprep.subr.mxu0 0.0
        %337 = vmatpush1.msra.mxu0 0.0
        %338 = vmatprep.subr.mxu0 0.0
        %339 = vmatpush1.msra.mxu0 0.0
        %340 = vmatprep.subr.mxu0 0.0
        %341 = vmatpush1.msra.mxu0 0.0
        %342 = vmatprep.subr.mxu0 0.0
        %343 = vmatpush1.msra.mxu0 0.0
        %344 = vmatprep.subr.mxu0 0.0
        %345 = vmatpush1.msra.mxu0 0.0
        %346 = vmatprep.subr.mxu0 0.0
        %347 = vmatpush1.msra.mxu0 0.0
        %348 = vmatprep.subr.mxu0 0.0
        %349 = vmatpush1.msra.mxu0 0.0
        %350 = vmatprep.subr.mxu0 0.0
        %351 = vmatpush1.msra.mxu0 0.0
        %352 = vmatprep.subr.mxu0 0.0
        %353 = vmatpush1.msra.mxu0 0.0
        %354 = vmatprep.subr.mxu0 0.0
        %355 = vmatpush1.msra.mxu0 0.0
        %356 = vmatprep.subr.mxu0 0.0
        %357 = vmatpush1.msra.mxu0 0.0
        %358 = vmatprep.subr.mxu0 0.0
        %359 = vmatpush1.msra.mxu0 0.0
        %360 = vmatprep.subr.mxu0 0.0
        %361 = vmatpush1.msra.mxu0 0.0
        %362 = vmatprep.subr.mxu0 0.0
        %363 = vmatpush1.msra.mxu0 0.0
        %364 = vmatprep.subr.mxu0 0.0
        %365 = vmatpush1.msra.mxu0 0.0
        %366 = vmatprep.subr.mxu0 0.0
        %367 = vmatpush1.msra.mxu0 0.0
        %368 = vmatprep.subr.mxu0 0.0
        %369 = vmatpush1.msra.mxu0 0.0
        %370 = vmatprep.subr.mxu0 0.0
        %371 = vmatpush1.msra.mxu0 0.0
        %372 = vmatprep.subr.mxu0 0.0
        %373 = vmatpush1.msra.mxu0 0.0
        %374 = vmatprep.subr.mxu0 0.0
        %375 = vmatpush1.msra.mxu0 0.0
        %376 = vmatprep.subr.mxu0 0.0
        %377 = vmatpush1.msra.mxu0 0.0
        %378 = vmatprep.subr.mxu0 0.0
        %379 = vmatpush1.msra.mxu0 0.0
        %380 = vmatprep.subr.mxu0 0.0
        %381 = vmatpush1.msra.mxu0 0.0
        %382 = vmatprep.subr.mxu0 0.0
        %383 = vmatpush1.msra.mxu0 0.0
        %384 = vmatprep.subr.mxu0 0.0
        %385 = vmatpush1.msra.mxu0 0.0
        %386 = vmatprep.subr.mxu0 0.0
        %387 = vmatpush1.msra.mxu0 0.0
        %388 = vmatprep.mubr.f32.mxu0 0.0
        %389 = vmatmul.mubr.f32.gmra.mrb[0].mxu0 %v318
        %v390 = vpop.f32.mrb[0].mxu0
        %v391 = vadd.f32 0.0, %v390
        %v392 = vpop.f32.mrb[0].mxu0
        %v393 = vadd.f32 0.0, %v392
        %394 = vdwg.mxu0
        %v396 = vsel %vm316, %v304, 0
        %v399 = vsel %vm170, %v227, 0
        %v402 = vsel %vm170, %v228, 0
        %404 = vmatprep.subr.mxu0 %v402
        %405 = vmatpush1.msra.mxu0 %v399
        %406 = vmatprep.subr.mxu0 0.0
        %407 = vmatpush1.msra.mxu0 0.0
        %408 = vmatprep.subr.mxu0 0.0
        %409 = vmatpush1.msra.mxu0 0.0
        %410 = vmatprep.subr.mxu0 0.0
        %411 = vmatpush1.msra.mxu0 0.0
        %412 = vmatprep.subr.mxu0 0.0
        %413 = vmatpush1.msra.mxu0 0.0
        %414 = vmatprep.subr.mxu0 0.0
        %415 = vmatpush1.msra.mxu0 0.0
        %416 = vmatprep.subr.mxu0 0.0
        %417 = vmatpush1.msra.mxu0 0.0
        %418 = vmatprep.subr.mxu0 0.0
        %419 = vmatpush1.msra.mxu0 0.0
        %420 = vmatprep.subr.mxu0 0.0
        %421 = vmatpush1.msra.mxu0 0.0
        %422 = vmatprep.subr.mxu0 0.0
        %423 = vmatpush1.msra.mxu0 0.0
        %424 = vmatprep.subr.mxu0 0.0
        %425 = vmatpush1.msra.mxu0 0.0
        %426 = vmatprep.subr.mxu0 0.0
        %427 = vmatpush1.msra.mxu0 0.0
        %428 = vmatprep.subr.mxu0 0.0
        %429 = vmatpush1.msra.mxu0 0.0
        %430 = vmatprep.subr.mxu0 0.0
        %431 = vmatpush1.msra.mxu0 0.0
        %432 = vmatprep.subr.mxu0 0.0
        %433 = vmatpush1.msra.mxu0 0.0
        %434 = vmatprep.subr.mxu0 0.0
        %435 = vmatpush1.msra.mxu0 0.0
        %436 = vmatprep.subr.mxu0 0.0
        %437 = vmatpush1.msra.mxu0 0.0
        %438 = vmatprep.subr.mxu0 0.0
        %439 = vmatpush1.msra.mxu0 0.0
        %440 = vmatprep.subr.mxu0 0.0
        %441 = vmatpush1.msra.mxu0 0.0
        %442 = vmatprep.subr.mxu0 0.0
        %443 = vmatpush1.msra.mxu0 0.0
        %444 = vmatprep.subr.mxu0 0.0
        %445 = vmatpush1.msra.mxu0 0.0
        %446 = vmatprep.subr.mxu0 0.0
        %447 = vmatpush1.msra.mxu0 0.0
        %448 = vmatprep.subr.mxu0 0.0
        %449 = vmatpush1.msra.mxu0 0.0
        %450 = vmatprep.subr.mxu0 0.0
        %451 = vmatpush1.msra.mxu0 0.0
        %452 = vmatprep.subr.mxu0 0.0
        %453 = vmatpush1.msra.mxu0 0.0
        %454 = vmatprep.subr.mxu0 0.0
        %455 = vmatpush1.msra.mxu0 0.0
        %456 = vmatprep.subr.mxu0 0.0
        %457 = vmatpush1.msra.mxu0 0.0
        %458 = vmatprep.subr.mxu0 0.0
        %459 = vmatpush1.msra.mxu0 0.0
        %460 = vmatprep.subr.mxu0 0.0
        %461 = vmatpush1.msra.mxu0 0.0
        %462 = vmatprep.subr.mxu0 0.0
        %463 = vmatpush1.msra.mxu0 0.0
        %464 = vmatprep.subr.mxu0 0.0
        %465 = vmatpush1.msra.mxu0 0.0
        %466 = vmatprep.subr.mxu0 0.0
        %467 = vmatpush1.msra.mxu0 0.0
        %468 = vmatprep.mubr.f32.mxu0 0.0
        %469 = vmatmul.mubr.f32.gmra.mrb[0].mxu0 %v396
        %v470 = vpop.f32.mrb[0].mxu0
        %v471 = vadd.f32 %v391, %v470
        %v472 = vpop.f32.mrb[0].mxu0
        %v473 = vadd.f32 %v393, %v472
        %474 = vdwg.mxu0
        %s475 = scalar_lea.vmem %s1, 8
        %v476 = vld [vmem:[%s475] sm:$0xf]
        %v478 = vsel %vm316, %v476, 0
        %v481 = vsel %vm170, %v257, 0
        %v484 = vsel %vm170, %v258, 0
        %486 = vmatprep.subr.mxu0 %v484
        %487 = vmatpush1.msra.mxu0 %v481
        %488 = vmatprep.subr.mxu0 0.0
        %489 = vmatpush1.msra.mxu0 0.0
        %490 = vmatprep.subr.mxu0 0.0
        %491 = vmatpush1.msra.mxu0 0.0
        %492 = vmatprep.subr.mxu0 0.0
        %493 = vmatpush1.msra.mxu0 0.0
        %494 = vmatprep.subr.mxu0 0.0
        %495 = vmatpush1.msra.mxu0 0.0
        %496 = vmatprep.subr.mxu0 0.0
        %497 = vmatpush1.msra.mxu0 0.0
        %498 = vmatprep.subr.mxu0 0.0
        %499 = vmatpush1.msra.mxu0 0.0
        %500 = vmatprep.subr.mxu0 0.0
        %501 = vmatpush1.msra.mxu0 0.0
        %502 = vmatprep.subr.mxu0 0.0
        %503 = vmatpush1.msra.mxu0 0.0
        %504 = vmatprep.subr.mxu0 0.0
        %505 = vmatpush1.msra.mxu0 0.0
        %506 = vmatprep.subr.mxu0 0.0
        %507 = vmatpush1.msra.mxu0 0.0
        %508 = vmatprep.subr.mxu0 0.0
        %509 = vmatpush1.msra.mxu0 0.0
        %510 = vmatprep.subr.mxu0 0.0
        %511 = vmatpush1.msra.mxu0 0.0
        %512 = vmatprep.subr.mxu0 0.0
        %513 = vmatpush1.msra.mxu0 0.0
        %514 = vmatprep.subr.mxu0 0.0
        %515 = vmatpush1.msra.mxu0 0.0
        %516 = vmatprep.subr.mxu0 0.0
        %517 = vmatpush1.msra.mxu0 0.0
        %518 = vmatprep.subr.mxu0 0.0
        %519 = vmatpush1.msra.mxu0 0.0
        %520 = vmatprep.subr.mxu0 0.0
        %521 = vmatpush1.msra.mxu0 0.0
        %522 = vmatprep.subr.mxu0 0.0
        %523 = vmatpush1.msra.mxu0 0.0
        %524 = vmatprep.subr.mxu0 0.0
        %525 = vmatpush1.msra.mxu0 0.0
        %526 = vmatprep.subr.mxu0 0.0
        %527 = vmatpush1.msra.mxu0 0.0
        %528 = vmatprep.subr.mxu0 0.0
        %529 = vmatpush1.msra.mxu0 0.0
        %530 = vmatprep.subr.mxu0 0.0
        %531 = vmatpush1.msra.mxu0 0.0
        %532 = vmatprep.subr.mxu0 0.0
        %533 = vmatpush1.msra.mxu0 0.0
        %534 = vmatprep.subr.mxu0 0.0
        %535 = vmatpush1.msra.mxu0 0.0
        %536 = vmatprep.subr.mxu0 0.0
        %537 = vmatpush1.msra.mxu0 0.0
        %538 = vmatprep.subr.mxu0 0.0
        %539 = vmatpush1.msra.mxu0 0.0
        %540 = vmatprep.subr.mxu0 0.0
        %541 = vmatpush1.msra.mxu0 0.0
        %542 = vmatprep.subr.mxu0 0.0
        %543 = vmatpush1.msra.mxu0 0.0
        %544 = vmatprep.subr.mxu0 0.0
        %545 = vmatpush1.msra.mxu0 0.0
        %546 = vmatprep.subr.mxu0 0.0
        %547 = vmatpush1.msra.mxu0 0.0
        %548 = vmatprep.subr.mxu0 0.0
        %549 = vmatpush1.msra.mxu0 0.0
        %550 = vmatprep.mubr.f32.mxu0 0.0
        %551 = vmatmul.mubr.f32.gmra.mrb[0].mxu0 %v478
        %v552 = vpop.f32.mrb[0].mxu0
        %v553 = vadd.f32 0.0, %v552
        %v554 = vpop.f32.mrb[0].mxu0
        %v555 = vadd.f32 0.0, %v554
        %556 = vdwg.mxu0
        %v557 = vadd.f32 %v471, %v553
        %v558 = vadd.f32 %v473, %v555
        %s559 = scalar_lea.vmem %s1, 12
        %v560 = vld [vmem:[%s559] sm:$0xf]
        %v562 = vsel %vm316, %v560, 0
        %v564 = vsel %vm170, %v259, 0
        %v566 = vsel %vm170, %v263, 0
        %568 = vmatprep.subr.mxu0 %v566
        %569 = vmatpush1.msra.mxu0 %v564
        %570 = vmatprep.subr.mxu0 0.0
        %571 = vmatpush1.msra.mxu0 0.0
        %572 = vmatprep.subr.mxu0 0.0
        %573 = vmatpush1.msra.mxu0 0.0
        %574 = vmatprep.subr.mxu0 0.0
        %575 = vmatpush1.msra.mxu0 0.0
        %576 = vmatprep.subr.mxu0 0.0
        %577 = vmatpush1.msra.mxu0 0.0
        %578 = vmatprep.subr.mxu0 0.0
        %579 = vmatpush1.msra.mxu0 0.0
        %580 = vmatprep.subr.mxu0 0.0
        %581 = vmatpush1.msra.mxu0 0.0
        %582 = vmatprep.subr.mxu0 0.0
        %583 = vmatpush1.msra.mxu0 0.0
        %584 = vmatprep.subr.mxu0 0.0
        %585 = vmatpush1.msra.mxu0 0.0
        %586 = vmatprep.subr.mxu0 0.0
        %587 = vmatpush1.msra.mxu0 0.0
        %588 = vmatprep.subr.mxu0 0.0
        %589 = vmatpush1.msra.mxu0 0.0
        %590 = vmatprep.subr.mxu0 0.0
        %591 = vmatpush1.msra.mxu0 0.0
        %592 = vmatprep.subr.mxu0 0.0
        %593 = vmatpush1.msra.mxu0 0.0
        %594 = vmatprep.subr.mxu0 0.0
        %595 = vmatpush1.msra.mxu0 0.0
        %596 = vmatprep.subr.mxu0 0.0
        %597 = vmatpush1.msra.mxu0 0.0
        %598 = vmatprep.subr.mxu0 0.0
        %599 = vmatpush1.msra.mxu0 0.0
        %600 = vmatprep.subr.mxu0 0.0
        %601 = vmatpush1.msra.mxu0 0.0
        %602 = vmatprep.subr.mxu0 0.0
        %603 = vmatpush1.msra.mxu0 0.0
        %604 = vmatprep.subr.mxu0 0.0
        %605 = vmatpush1.msra.mxu0 0.0
        %606 = vmatprep.subr.mxu0 0.0
        %607 = vmatpush1.msra.mxu0 0.0
        %608 = vmatprep.subr.mxu0 0.0
        %609 = vmatpush1.msra.mxu0 0.0
        %610 = vmatprep.subr.mxu0 0.0
        %611 = vmatpush1.msra.mxu0 0.0
        %612 = vmatprep.subr.mxu0 0.0
        %613 = vmatpush1.msra.mxu0 0.0
        %614 = vmatprep.subr.mxu0 0.0
        %615 = vmatpush1.msra.mxu0 0.0
        %616 = vmatprep.subr.mxu0 0.0
        %617 = vmatpush1.msra.mxu0 0.0
        %618 = vmatprep.subr.mxu0 0.0
        %619 = vmatpush1.msra.mxu0 0.0
        %620 = vmatprep.subr.mxu0 0.0
        %621 = vmatpush1.msra.mxu0 0.0
        %622 = vmatprep.subr.mxu0 0.0
        %623 = vmatpush1.msra.mxu0 0.0
        %624 = vmatprep.subr.mxu0 0.0
        %625 = vmatpush1.msra.mxu0 0.0
        %626 = vmatprep.subr.mxu0 0.0
        %627 = vmatpush1.msra.mxu0 0.0
        %628 = vmatprep.subr.mxu0 0.0
        %629 = vmatpush1.msra.mxu0 0.0
        %630 = vmatprep.subr.mxu0 0.0
        %631 = vmatpush1.msra.mxu0 0.0
        %632 = vmatprep.mubr.f32.mxu0 0.0
        %633 = vmatmul.mubr.f32.gmra.mrb[0].mxu0 %v562
        %v634 = vpop.f32.mrb[0].mxu0
        %v635 = vadd.f32 0.0, %v634
        %v636 = vpop.f32.mrb[0].mxu0
        %v637 = vadd.f32 0.0, %v636
        %638 = vdwg.mxu0
        %v639 = vadd.f32 %v557, %v635
        %v640 = vadd.f32 %v558, %v637
        %642 = vset.pattern.permute.xlu0 0
        %643 = vperm.xlu0 %642, %v303
        %v644 = vpop.permute.xlu0 %643
        %v646 = vadd.f32 %v639, %v644
        %v647 = vadd.f32 %v640, %v644
        %v650 = vcombine.low %v646, %v647
        %652 = vst [vmem:[%s163] sm:$0xff] %v650
        %s653 = scalar_lea.vmem %s1, 16
        %v654 = vld [vmem:[%s653] sm:$0xf]
        %s655 = scalar_lea.vmem %s1, 20
        %v656 = vld [vmem:[%s655] sm:$0xf]
        %v658 = vsel %vm316, %v656, 0
        %v661 = vsel %vm170, %v244, 0
        %v664 = vsel %vm170, %v245, 0
        %666 = vmatprep.subr.mxu0 %v664
        %667 = vmatpush1.msra.mxu0 %v661
        %668 = vmatprep.subr.mxu0 0.0
        %669 = vmatpush1.msra.mxu0 0.0
        %670 = vmatprep.subr.mxu0 0.0
        %671 = vmatpush1.msra.mxu0 0.0
        %672 = vmatprep.subr.mxu0 0.0
        %673 = vmatpush1.msra.mxu0 0.0
        %674 = vmatprep.subr.mxu0 0.0
        %675 = vmatpush1.msra.mxu0 0.0
        %676 = vmatprep.subr.mxu0 0.0
        %677 = vmatpush1.msra.mxu0 0.0
        %678 = vmatprep.subr.mxu0 0.0
        %679 = vmatpush1.msra.mxu0 0.0
        %680 = vmatprep.subr.mxu0 0.0
        %681 = vmatpush1.msra.mxu0 0.0
        %682 = vmatprep.subr.mxu0 0.0
        %683 = vmatpush1.msra.mxu0 0.0
        %684 = vmatprep.subr.mxu0 0.0
        %685 = vmatpush1.msra.mxu0 0.0
        %686 = vmatprep.subr.mxu0 0.0
        %687 = vmatpush1.msra.mxu0 0.0
        %688 = vmatprep.subr.mxu0 0.0
        %689 = vmatpush1.msra.mxu0 0.0
        %690 = vmatprep.subr.mxu0 0.0
        %691 = vmatpush1.msra.mxu0 0.0
        %692 = vmatprep.subr.mxu0 0.0
        %693 = vmatpush1.msra.mxu0 0.0
        %694 = vmatprep.subr.mxu0 0.0
        %695 = vmatpush1.msra.mxu0 0.0
        %696 = vmatprep.subr.mxu0 0.0
        %697 = vmatpush1.msra.mxu0 0.0
        %698 = vmatprep.subr.mxu0 0.0
        %699 = vmatpush1.msra.mxu0 0.0
        %700 = vmatprep.subr.mxu0 0.0
        %701 = vmatpush1.msra.mxu0 0.0
        %702 = vmatprep.subr.mxu0 0.0
        %703 = vmatpush1.msra.mxu0 0.0
        %704 = vmatprep.subr.mxu0 0.0
        %705 = vmatpush1.msra.mxu0 0.0
        %706 = vmatprep.subr.mxu0 0.0
        %707 = vmatpush1.msra.mxu0 0.0
        %708 = vmatprep.subr.mxu0 0.0
        %709 = vmatpush1.msra.mxu0 0.0
        %710 = vmatprep.subr.mxu0 0.0
        %711 = vmatpush1.msra.mxu0 0.0
        %712 = vmatprep.subr.mxu0 0.0
        %713 = vmatpush1.msra.mxu0 0.0
        %714 = vmatprep.subr.mxu0 0.0
        %715 = vmatpush1.msra.mxu0 0.0
        %716 = vmatprep.subr.mxu0 0.0
        %717 = vmatpush1.msra.mxu0 0.0
        %718 = vmatprep.subr.mxu0 0.0
        %719 = vmatpush1.msra.mxu0 0.0
        %720 = vmatprep.subr.mxu0 0.0
        %721 = vmatpush1.msra.mxu0 0.0
        %722 = vmatprep.subr.mxu0 0.0
        %723 = vmatpush1.msra.mxu0 0.0
        %724 = vmatprep.subr.mxu0 0.0
        %725 = vmatpush1.msra.mxu0 0.0
        %726 = vmatprep.subr.mxu0 0.0
        %727 = vmatpush1.msra.mxu0 0.0
        %728 = vmatprep.subr.mxu0 0.0
        %729 = vmatpush1.msra.mxu0 0.0
        %730 = vmatprep.mubr.f32.mxu0 0.0
        %731 = vmatmul.mubr.f32.gmra.mrb[0].mxu0 %v658
        %v732 = vpop.f32.mrb[0].mxu0
        %v733 = vadd.f32 0.0, %v732
        %v734 = vpop.f32.mrb[0].mxu0
        %v735 = vadd.f32 0.0, %v734
        %736 = vdwg.mxu0
        %v738 = vsel %vm316, %v654, 0
        %740 = vmatprep.subr.mxu0 %v322
        %741 = vmatpush1.msra.mxu0 %v320
        %742 = vmatprep.subr.mxu0 0.0
        %743 = vmatpush1.msra.mxu0 0.0
        %744 = vmatprep.subr.mxu0 0.0
        %745 = vmatpush1.msra.mxu0 0.0
        %746 = vmatprep.subr.mxu0 0.0
        %747 = vmatpush1.msra.mxu0 0.0
        %748 = vmatprep.subr.mxu0 0.0
        %749 = vmatpush1.msra.mxu0 0.0
        %750 = vmatprep.subr.mxu0 0.0
        %751 = vmatpush1.msra.mxu0 0.0
        %752 = vmatprep.subr.mxu0 0.0
        %753 = vmatpush1.msra.mxu0 0.0
        %754 = vmatprep.subr.mxu0 0.0
        %755 = vmatpush1.msra.mxu0 0.0
        %756 = vmatprep.subr.mxu0 0.0
        %757 = vmatpush1.msra.mxu0 0.0
        %758 = vmatprep.subr.mxu0 0.0
        %759 = vmatpush1.msra.mxu0 0.0
        %760 = vmatprep.subr.mxu0 0.0
        %761 = vmatpush1.msra.mxu0 0.0
        %762 = vmatprep.subr.mxu0 0.0
        %763 = vmatpush1.msra.mxu0 0.0
        %764 = vmatprep.subr.mxu0 0.0
        %765 = vmatpush1.msra.mxu0 0.0
        %766 = vmatprep.subr.mxu0 0.0
        %767 = vmatpush1.msra.mxu0 0.0
        %768 = vmatprep.subr.mxu0 0.0
        %769 = vmatpush1.msra.mxu0 0.0
        %770 = vmatprep.subr.mxu0 0.0
        %771 = vmatpush1.msra.mxu0 0.0
        %772 = vmatprep.subr.mxu0 0.0
        %773 = vmatpush1.msra.mxu0 0.0
        %774 = vmatprep.subr.mxu0 0.0
        %775 = vmatpush1.msra.mxu0 0.0
        %776 = vmatprep.subr.mxu0 0.0
        %777 = vmatpush1.msra.mxu0 0.0
        %778 = vmatprep.subr.mxu0 0.0
        %779 = vmatpush1.msra.mxu0 0.0
        %780 = vmatprep.subr.mxu0 0.0
        %781 = vmatpush1.msra.mxu0 0.0
        %782 = vmatprep.subr.mxu0 0.0
        %783 = vmatpush1.msra.mxu0 0.0
        %784 = vmatprep.subr.mxu0 0.0
        %785 = vmatpush1.msra.mxu0 0.0
        %786 = vmatprep.subr.mxu0 0.0
        %787 = vmatpush1.msra.mxu0 0.0
        %788 = vmatprep.subr.mxu0 0.0
        %789 = vmatpush1.msra.mxu0 0.0
        %790 = vmatprep.subr.mxu0 0.0
        %791 = vmatpush1.msra.mxu0 0.0
        %792 = vmatprep.subr.mxu0 0.0
        %793 = vmatpush1.msra.mxu0 0.0
        %794 = vmatprep.subr.mxu0 0.0
        %795 = vmatpush1.msra.mxu0 0.0
        %796 = vmatprep.subr.mxu0 0.0
        %797 = vmatpush1.msra.mxu0 0.0
        %798 = vmatprep.subr.mxu0 0.0
        %799 = vmatpush1.msra.mxu0 0.0
        %800 = vmatprep.subr.mxu0 0.0
        %801 = vmatpush1.msra.mxu0 0.0
        %802 = vmatprep.subr.mxu0 0.0
        %803 = vmatpush1.msra.mxu0 0.0
        %804 = vmatprep.mubr.f32.mxu0 0.0
        %805 = vmatmul.mubr.f32.gmra.mrb[0].mxu0 %v738
        %v806 = vpop.f32.mrb[0].mxu0
        %v807 = vadd.f32 %v733, %v806
        %v808 = vpop.f32.mrb[0].mxu0
        %v809 = vadd.f32 %v735, %v808
        %810 = vdwg.mxu0
        %s811 = scalar_lea.vmem %s1, 24
        %v812 = vld [vmem:[%s811] sm:$0xf]
        %v814 = vsel %vm316, %v812, 0
        %816 = vmatprep.subr.mxu0 %v566
        %817 = vmatpush1.msra.mxu0 %v564
        %818 = vmatprep.subr.mxu0 0.0
        %819 = vmatpush1.msra.mxu0 0.0
        %820 = vmatprep.subr.mxu0 0.0
        %821 = vmatpush1.msra.mxu0 0.0
        %822 = vmatprep.subr.mxu0 0.0
        %823 = vmatpush1.msra.mxu0 0.0
        %824 = vmatprep.subr.mxu0 0.0
        %825 = vmatpush1.msra.mxu0 0.0
        %826 = vmatprep.subr.mxu0 0.0
        %827 = vmatpush1.msra.mxu0 0.0
        %828 = vmatprep.subr.mxu0 0.0
        %829 = vmatpush1.msra.mxu0 0.0
        %830 = vmatprep.subr.mxu0 0.0
        %831 = vmatpush1.msra.mxu0 0.0
        %832 = vmatprep.subr.mxu0 0.0
        %833 = vmatpush1.msra.mxu0 0.0
        %834 = vmatprep.subr.mxu0 0.0
        %835 = vmatpush1.msra.mxu0 0.0
        %836 = vmatprep.subr.mxu0 0.0
        %837 = vmatpush1.msra.mxu0 0.0
        %838 = vmatprep.subr.mxu0 0.0
        %839 = vmatpush1.msra.mxu0 0.0
        %840 = vmatprep.subr.mxu0 0.0
        %841 = vmatpush1.msra.mxu0 0.0
        %842 = vmatprep.subr.mxu0 0.0
        %843 = vmatpush1.msra.mxu0 0.0
        %844 = vmatprep.subr.mxu0 0.0
        %845 = vmatpush1.msra.mxu0 0.0
        %846 = vmatprep.subr.mxu0 0.0
        %847 = vmatpush1.msra.mxu0 0.0
        %848 = vmatprep.subr.mxu0 0.0
        %849 = vmatpush1.msra.mxu0 0.0
        %850 = vmatprep.subr.mxu0 0.0
        %851 = vmatpush1.msra.mxu0 0.0
        %852 = vmatprep.subr.mxu0 0.0
        %853 = vmatpush1.msra.mxu0 0.0
        %854 = vmatprep.subr.mxu0 0.0
        %855 = vmatpush1.msra.mxu0 0.0
        %856 = vmatprep.subr.mxu0 0.0
        %857 = vmatpush1.msra.mxu0 0.0
        %858 = vmatprep.subr.mxu0 0.0
        %859 = vmatpush1.msra.mxu0 0.0
        %860 = vmatprep.subr.mxu0 0.0
        %861 = vmatpush1.msra.mxu0 0.0
        %862 = vmatprep.subr.mxu0 0.0
        %863 = vmatpush1.msra.mxu0 0.0
        %864 = vmatprep.subr.mxu0 0.0
        %865 = vmatpush1.msra.mxu0 0.0
        %866 = vmatprep.subr.mxu0 0.0
        %867 = vmatpush1.msra.mxu0 0.0
        %868 = vmatprep.subr.mxu0 0.0
        %869 = vmatpush1.msra.mxu0 0.0
        %870 = vmatprep.subr.mxu0 0.0
        %871 = vmatpush1.msra.mxu0 0.0
        %872 = vmatprep.subr.mxu0 0.0
        %873 = vmatpush1.msra.mxu0 0.0
        %874 = vmatprep.subr.mxu0 0.0
        %875 = vmatpush1.msra.mxu0 0.0
        %876 = vmatprep.subr.mxu0 0.0
        %877 = vmatpush1.msra.mxu0 0.0
        %878 = vmatprep.subr.mxu0 0.0
        %879 = vmatpush1.msra.mxu0 0.0
        %880 = vmatprep.mubr.f32.mxu0 0.0
        %881 = vmatmul.mubr.f32.gmra.mrb[0].mxu0 %v814
        %v882 = vpop.f32.mrb[0].mxu0
        %v883 = vadd.f32 0.0, %v882
        %v884 = vpop.f32.mrb[0].mxu0
        %v885 = vadd.f32 0.0, %v884
        %886 = vdwg.mxu0
        %v887 = vadd.f32 %v807, %v883
        %v888 = vadd.f32 %v809, %v885
        %s889 = scalar_lea.vmem %s1, 28
        %v890 = vld [vmem:[%s889] sm:$0xf]
        %v892 = vsel %vm316, %v890, 0
        %v895 = vsel %vm170, %v275, 0
        %v898 = vsel %vm170, %v276, 0
        %900 = vmatprep.subr.mxu0 %v898
        %901 = vmatpush1.msra.mxu0 %v895
        %902 = vmatprep.subr.mxu0 0.0
        %903 = vmatpush1.msra.mxu0 0.0
        %904 = vmatprep.subr.mxu0 0.0
        %905 = vmatpush1.msra.mxu0 0.0
        %906 = vmatprep.subr.mxu0 0.0
        %907 = vmatpush1.msra.mxu0 0.0
        %908 = vmatprep.subr.mxu0 0.0
        %909 = vmatpush1.msra.mxu0 0.0
        %910 = vmatprep.subr.mxu0 0.0
        %911 = vmatpush1.msra.mxu0 0.0
        %912 = vmatprep.subr.mxu0 0.0
        %913 = vmatpush1.msra.mxu0 0.0
        %914 = vmatprep.subr.mxu0 0.0
        %915 = vmatpush1.msra.mxu0 0.0
        %916 = vmatprep.subr.mxu0 0.0
        %917 = vmatpush1.msra.mxu0 0.0
        %918 = vmatprep.subr.mxu0 0.0
        %919 = vmatpush1.msra.mxu0 0.0
        %920 = vmatprep.subr.mxu0 0.0
        %921 = vmatpush1.msra.mxu0 0.0
        %922 = vmatprep.subr.mxu0 0.0
        %923 = vmatpush1.msra.mxu0 0.0
        %924 = vmatprep.subr.mxu0 0.0
        %925 = vmatpush1.msra.mxu0 0.0
        %926 = vmatprep.subr.mxu0 0.0
        %927 = vmatpush1.msra.mxu0 0.0
        %928 = vmatprep.subr.mxu0 0.0
        %929 = vmatpush1.msra.mxu0 0.0
        %930 = vmatprep.subr.mxu0 0.0
        %931 = vmatpush1.msra.mxu0 0.0
        %932 = vmatprep.subr.mxu0 0.0
        %933 = vmatpush1.msra.mxu0 0.0
        %934 = vmatprep.subr.mxu0 0.0
        %935 = vmatpush1.msra.mxu0 0.0
        %936 = vmatprep.subr.mxu0 0.0
        %937 = vmatpush1.msra.mxu0 0.0
        %938 = vmatprep.subr.mxu0 0.0
        %939 = vmatpush1.msra.mxu0 0.0
        %940 = vmatprep.subr.mxu0 0.0
        %941 = vmatpush1.msra.mxu0 0.0
        %942 = vmatprep.subr.mxu0 0.0
        %943 = vmatpush1.msra.mxu0 0.0
        %944 = vmatprep.subr.mxu0 0.0
        %945 = vmatpush1.msra.mxu0 0.0
        %946 = vmatprep.subr.mxu0 0.0
        %947 = vmatpush1.msra.mxu0 0.0
        %948 = vmatprep.subr.mxu0 0.0
        %949 = vmatpush1.msra.mxu0 0.0
        %950 = vmatprep.subr.mxu0 0.0
        %951 = vmatpush1.msra.mxu0 0.0
        %952 = vmatprep.subr.mxu0 0.0
        %953 = vmatpush1.msra.mxu0 0.0
        %954 = vmatprep.subr.mxu0 0.0
        %955 = vmatpush1.msra.mxu0 0.0
        %956 = vmatprep.subr.mxu0 0.0
        %957 = vmatpush1.msra.mxu0 0.0
        %958 = vmatprep.subr.mxu0 0.0
        %959 = vmatpush1.msra.mxu0 0.0
        %960 = vmatprep.subr.mxu0 0.0
        %961 = vmatpush1.msra.mxu0 0.0
        %962 = vmatprep.subr.mxu0 0.0
        %963 = vmatpush1.msra.mxu0 0.0
        %964 = vmatprep.mubr.f32.mxu0 0.0
        %965 = vmatmul.mubr.f32.gmra.mrb[0].mxu0 %v892
        %v966 = vpop.f32.mrb[0].mxu0
        %v967 = vadd.f32 0.0, %v966
        %v968 = vpop.f32.mrb[0].mxu0
        %v969 = vadd.f32 0.0, %v968
        %970 = vdwg.mxu0
        %v971 = vadd.f32 %v887, %v967
        %v972 = vadd.f32 %v888, %v969
        %v973 = vadd.f32 %v971, %v644
        %v974 = vadd.f32 %v972, %v644
        %v977 = vcombine.low %v973, %v974
        %s979 = scalar_lea.vmem %s163, 8 [#allocation3]
        %980 = vst [vmem:[%s979] sm:$0xff] %v977
        %s981 = scalar_lea.vmem %s1, 32
        %v982 = vld [vmem:[%s981] sm:$0xf]
        %s983 = scalar_lea.vmem %s1, 36
        %v984 = vld [vmem:[%s983] sm:$0xf]
        %v986 = vsel %vm316, %v984, 0
        %988 = vmatprep.subr.mxu0 %v566
        %989 = vmatpush1.msra.mxu0 %v564
        %990 = vmatprep.subr.mxu0 0.0
        %991 = vmatpush1.msra.mxu0 0.0
        %992 = vmatprep.subr.mxu0 0.0
        %993 = vmatpush1.msra.mxu0 0.0
        %994 = vmatprep.subr.mxu0 0.0
        %995 = vmatpush1.msra.mxu0 0.0
        %996 = vmatprep.subr.mxu0 0.0
        %997 = vmatpush1.msra.mxu0 0.0
        %998 = vmatprep.subr.mxu0 0.0
        %999 = vmatpush1.msra.mxu0 0.0
        %1000 = vmatprep.subr.mxu0 0.0
        %1001 = vmatpush1.msra.mxu0 0.0
        %1002 = vmatprep.subr.mxu0 0.0
        %1003 = vmatpush1.msra.mxu0 0.0
        %1004 = vmatprep.subr.mxu0 0.0
        %1005 = vmatpush1.msra.mxu0 0.0
        %1006 = vmatprep.subr.mxu0 0.0
        %1007 = vmatpush1.msra.mxu0 0.0
        %1008 = vmatprep.subr.mxu0 0.0
        %1009 = vmatpush1.msra.mxu0 0.0
        %1010 = vmatprep.subr.mxu0 0.0
        %1011 = vmatpush1.msra.mxu0 0.0
        %1012 = vmatprep.subr.mxu0 0.0
        %1013 = vmatpush1.msra.mxu0 0.0
        %1014 = vmatprep.subr.mxu0 0.0
        %1015 = vmatpush1.msra.mxu0 0.0
        %1016 = vmatprep.subr.mxu0 0.0
        %1017 = vmatpush1.msra.mxu0 0.0
        %1018 = vmatprep.subr.mxu0 0.0
        %1019 = vmatpush1.msra.mxu0 0.0
        %1020 = vmatprep.subr.mxu0 0.0
        %1021 = vmatpush1.msra.mxu0 0.0
        %1022 = vmatprep.subr.mxu0 0.0
        %1023 = vmatpush1.msra.mxu0 0.0
        %1024 = vmatprep.subr.mxu0 0.0
        %1025 = vmatpush1.msra.mxu0 0.0
        %1026 = vmatprep.subr.mxu0 0.0
        %1027 = vmatpush1.msra.mxu0 0.0
        %1028 = vmatprep.subr.mxu0 0.0
        %1029 = vmatpush1.msra.mxu0 0.0
        %1030 = vmatprep.subr.mxu0 0.0
        %1031 = vmatpush1.msra.mxu0 0.0
        %1032 = vmatprep.subr.mxu0 0.0
        %1033 = vmatpush1.msra.mxu0 0.0
        %1034 = vmatprep.subr.mxu0 0.0
        %1035 = vmatpush1.msra.mxu0 0.0
        %1036 = vmatprep.subr.mxu0 0.0
        %1037 = vmatpush1.msra.mxu0 0.0
        %1038 = vmatprep.subr.mxu0 0.0
        %1039 = vmatpush1.msra.mxu0 0.0
        %1040 = vmatprep.subr.mxu0 0.0
        %1041 = vmatpush1.msra.mxu0 0.0
        %1042 = vmatprep.subr.mxu0 0.0
        %1043 = vmatpush1.msra.mxu0 0.0
        %1044 = vmatprep.subr.mxu0 0.0
        %1045 = vmatpush1.msra.mxu0 0.0
        %1046 = vmatprep.subr.mxu0 0.0
        %1047 = vmatpush1.msra.mxu0 0.0
        %1048 = vmatprep.subr.mxu0 0.0
        %1049 = vmatpush1.msra.mxu0 0.0
        %1050 = vmatprep.subr.mxu0 0.0
        %1051 = vmatpush1.msra.mxu0 0.0
        %1052 = vmatprep.mubr.f32.mxu0 0.0
        %1053 = vmatmul.mubr.f32.gmra.mrb[0].mxu0 %v986
        %v1054 = vpop.f32.mrb[0].mxu0
        %v1055 = vadd.f32 0.0, %v1054
        %v1056 = vpop.f32.mrb[0].mxu0
        %v1057 = vadd.f32 0.0, %v1056
        %1058 = vdwg.mxu0
        %v1060 = vsel %vm316, %v982, 0
        %1062 = vmatprep.subr.mxu0 %v484
        %1063 = vmatpush1.msra.mxu0 %v481
        %1064 = vmatprep.subr.mxu0 0.0
        %1065 = vmatpush1.msra.mxu0 0.0
        %1066 = vmatprep.subr.mxu0 0.0
        %1067 = vmatpush1.msra.mxu0 0.0
        %1068 = vmatprep.subr.mxu0 0.0
        %1069 = vmatpush1.msra.mxu0 0.0
        %1070 = vmatprep.subr.mxu0 0.0
        %1071 = vmatpush1.msra.mxu0 0.0
        %1072 = vmatprep.subr.mxu0 0.0
        %1073 = vmatpush1.msra.mxu0 0.0
        %1074 = vmatprep.subr.mxu0 0.0
        %1075 = vmatpush1.msra.mxu0 0.0
        %1076 = vmatprep.subr.mxu0 0.0
        %1077 = vmatpush1.msra.mxu0 0.0
        %1078 = vmatprep.subr.mxu0 0.0
        %1079 = vmatpush1.msra.mxu0 0.0
        %1080 = vmatprep.subr.mxu0 0.0
        %1081 = vmatpush1.msra.mxu0 0.0
        %1082 = vmatprep.subr.mxu0 0.0
        %1083 = vmatpush1.msra.mxu0 0.0
        %1084 = vmatprep.subr.mxu0 0.0
        %1085 = vmatpush1.msra.mxu0 0.0
        %1086 = vmatprep.subr.mxu0 0.0
        %1087 = vmatpush1.msra.mxu0 0.0
        %1088 = vmatprep.subr.mxu0 0.0
        %1089 = vmatpush1.msra.mxu0 0.0
        %1090 = vmatprep.subr.mxu0 0.0
        %1091 = vmatpush1.msra.mxu0 0.0
        %1092 = vmatprep.subr.mxu0 0.0
        %1093 = vmatpush1.msra.mxu0 0.0
        %1094 = vmatprep.subr.mxu0 0.0
        %1095 = vmatpush1.msra.mxu0 0.0
        %1096 = vmatprep.subr.mxu0 0.0
        %1097 = vmatpush1.msra.mxu0 0.0
        %1098 = vmatprep.subr.mxu0 0.0
        %1099 = vmatpush1.msra.mxu0 0.0
        %1100 = vmatprep.subr.mxu0 0.0
        %1101 = vmatpush1.msra.mxu0 0.0
        %1102 = vmatprep.subr.mxu0 0.0
        %1103 = vmatpush1.msra.mxu0 0.0
        %1104 = vmatprep.subr.mxu0 0.0
        %1105 = vmatpush1.msra.mxu0 0.0
        %1106 = vmatprep.subr.mxu0 0.0
        %1107 = vmatpush1.msra.mxu0 0.0
        %1108 = vmatprep.subr.mxu0 0.0
        %1109 = vmatpush1.msra.mxu0 0.0
        %1110 = vmatprep.subr.mxu0 0.0
        %1111 = vmatpush1.msra.mxu0 0.0
        %1112 = vmatprep.subr.mxu0 0.0
        %1113 = vmatpush1.msra.mxu0 0.0
        %1114 = vmatprep.subr.mxu0 0.0
        %1115 = vmatpush1.msra.mxu0 0.0
        %1116 = vmatprep.subr.mxu0 0.0
        %1117 = vmatpush1.msra.mxu0 0.0
        %1118 = vmatprep.subr.mxu0 0.0
        %1119 = vmatpush1.msra.mxu0 0.0
        %1120 = vmatprep.subr.mxu0 0.0
        %1121 = vmatpush1.msra.mxu0 0.0
        %1122 = vmatprep.subr.mxu0 0.0
        %1123 = vmatpush1.msra.mxu0 0.0
        %1124 = vmatprep.subr.mxu0 0.0
        %1125 = vmatpush1.msra.mxu0 0.0
        %1126 = vmatprep.mubr.f32.mxu0 0.0
        %1127 = vmatmul.mubr.f32.gmra.mrb[0].mxu0 %v1060
        %v1128 = vpop.f32.mrb[0].mxu0
        %v1129 = vadd.f32 %v1055, %v1128
        %v1130 = vpop.f32.mrb[0].mxu0
        %v1131 = vadd.f32 %v1057, %v1130
        %1132 = vdwg.mxu0
        %s1133 = scalar_lea.vmem %s1, 40
        %v1134 = vld [vmem:[%s1133] sm:$0xf]
        %v1136 = vsel %vm316, %v1134, 0
        %v1139 = vsel %vm170, %v288, 0
        %v1142 = vsel %vm170, %v289, 0
        %1144 = vmatprep.subr.mxu0 %v1142
        %1145 = vmatpush1.msra.mxu0 %v1139
        %1146 = vmatprep.subr.mxu0 0.0
        %1147 = vmatpush1.msra.mxu0 0.0
        %1148 = vmatprep.subr.mxu0 0.0
        %1149 = vmatpush1.msra.mxu0 0.0
        %1150 = vmatprep.subr.mxu0 0.0
        %1151 = vmatpush1.msra.mxu0 0.0
        %1152 = vmatprep.subr.mxu0 0.0
        %1153 = vmatpush1.msra.mxu0 0.0
        %1154 = vmatprep.subr.mxu0 0.0
        %1155 = vmatpush1.msra.mxu0 0.0
        %1156 = vmatprep.subr.mxu0 0.0
        %1157 = vmatpush1.msra.mxu0 0.0
        %1158 = vmatprep.subr.mxu0 0.0
        %1159 = vmatpush1.msra.mxu0 0.0
        %1160 = vmatprep.subr.mxu0 0.0
        %1161 = vmatpush1.msra.mxu0 0.0
        %1162 = vmatprep.subr.mxu0 0.0
        %1163 = vmatpush1.msra.mxu0 0.0
        %1164 = vmatprep.subr.mxu0 0.0
        %1165 = vmatpush1.msra.mxu0 0.0
        %1166 = vmatprep.subr.mxu0 0.0
        %1167 = vmatpush1.msra.mxu0 0.0
        %1168 = vmatprep.subr.mxu0 0.0
        %1169 = vmatpush1.msra.mxu0 0.0
        %1170 = vmatprep.subr.mxu0 0.0
        %1171 = vmatpush1.msra.mxu0 0.0
        %1172 = vmatprep.subr.mxu0 0.0
        %1173 = vmatpush1.msra.mxu0 0.0
        %1174 = vmatprep.subr.mxu0 0.0
        %1175 = vmatpush1.msra.mxu0 0.0
        %1176 = vmatprep.subr.mxu0 0.0
        %1177 = vmatpush1.msra.mxu0 0.0
        %1178 = vmatprep.subr.mxu0 0.0
        %1179 = vmatpush1.msra.mxu0 0.0
        %1180 = vmatprep.subr.mxu0 0.0
        %1181 = vmatpush1.msra.mxu0 0.0
        %1182 = vmatprep.subr.mxu0 0.0
        %1183 = vmatpush1.msra.mxu0 0.0
        %1184 = vmatprep.subr.mxu0 0.0
        %1185 = vmatpush1.msra.mxu0 0.0
        %1186 = vmatprep.subr.mxu0 0.0
        %1187 = vmatpush1.msra.mxu0 0.0
        %1188 = vmatprep.subr.mxu0 0.0
        %1189 = vmatpush1.msra.mxu0 0.0
        %1190 = vmatprep.subr.mxu0 0.0
        %1191 = vmatpush1.msra.mxu0 0.0
        %1192 = vmatprep.subr.mxu0 0.0
        %1193 = vmatpush1.msra.mxu0 0.0
        %1194 = vmatprep.subr.mxu0 0.0
        %1195 = vmatpush1.msra.mxu0 0.0
        %1196 = vmatprep.subr.mxu0 0.0
        %1197 = vmatpush1.msra.mxu0 0.0
        %1198 = vmatprep.subr.mxu0 0.0
        %1199 = vmatpush1.msra.mxu0 0.0
        %1200 = vmatprep.subr.mxu0 0.0
        %1201 = vmatpush1.msra.mxu0 0.0
        %1202 = vmatprep.subr.mxu0 0.0
        %1203 = vmatpush1.msra.mxu0 0.0
        %1204 = vmatprep.subr.mxu0 0.0
        %1205 = vmatpush1.msra.mxu0 0.0
        %1206 = vmatprep.subr.mxu0 0.0
        %1207 = vmatpush1.msra.mxu0 0.0
        %1208 = vmatprep.mubr.f32.mxu0 0.0
        %1209 = vmatmul.mubr.f32.gmra.mrb[0].mxu0 %v1136
        %v1210 = vpop.f32.mrb[0].mxu0
        %v1211 = vadd.f32 0.0, %v1210
        %v1212 = vpop.f32.mrb[0].mxu0
        %v1213 = vadd.f32 0.0, %v1212
        %1214 = vdwg.mxu0
        %v1215 = vadd.f32 %v1129, %v1211
        %v1216 = vadd.f32 %v1131, %v1213
        %s1217 = scalar_lea.vmem %s1, 44
        %v1218 = vld [vmem:[%s1217] sm:$0xf]
        %1219 = vrot.lane.b32.xlu0 %v259, 112
        %v1220 = vpop.permute.xlu0 %1219
        %1221 = vrot.lane.b32.xlu0 %v263, 112
        %v1222 = vpop.permute.xlu0 %1221
        %1223 = vrot.lane.b32.xlu0 %v260, 112
        %v1224 = vpop.permute.xlu0 %1223
        %vm1225 = vcmask 916480
        %v1226 = vsel %vm1225, %v1220, %v1222
        %v1227 = vsel %vm1225, %v1222, %v1224
        %v1229 = vsel %vm316, %v1218, 0
        %v1231 = vsel %vm170, %v1226, 0
        %v1233 = vsel %vm170, %v1227, 0
        %1235 = vmatprep.subr.mxu0 %v1233
        %1236 = vmatpush1.msra.mxu0 %v1231
        %1237 = vmatprep.subr.mxu0 0.0
        %1238 = vmatpush1.msra.mxu0 0.0
        %1239 = vmatprep.subr.mxu0 0.0
        %1240 = vmatpush1.msra.mxu0 0.0
        %1241 = vmatprep.subr.mxu0 0.0
        %1242 = vmatpush1.msra.mxu0 0.0
        %1243 = vmatprep.subr.mxu0 0.0
        %1244 = vmatpush1.msra.mxu0 0.0
        %1245 = vmatprep.subr.mxu0 0.0
        %1246 = vmatpush1.msra.mxu0 0.0
        %1247 = vmatprep.subr.mxu0 0.0
        %1248 = vmatpush1.msra.mxu0 0.0
        %1249 = vmatprep.subr.mxu0 0.0
        %1250 = vmatpush1.msra.mxu0 0.0
        %1251 = vmatprep.subr.mxu0 0.0
        %1252 = vmatpush1.msra.mxu0 0.0
        %1253 = vmatprep.subr.mxu0 0.0
        %1254 = vmatpush1.msra.mxu0 0.0
        %1255 = vmatprep.subr.mxu0 0.0
        %1256 = vmatpush1.msra.mxu0 0.0
        %1257 = vmatprep.subr.mxu0 0.0
        %1258 = vmatpush1.msra.mxu0 0.0
        %1259 = vmatprep.subr.mxu0 0.0
        %1260 = vmatpush1.msra.mxu0 0.0
        %1261 = vmatprep.subr.mxu0 0.0
        %1262 = vmatpush1.msra.mxu0 0.0
        %1263 = vmatprep.subr.mxu0 0.0
        %1264 = vmatpush1.msra.mxu0 0.0
        %1265 = vmatprep.subr.mxu0 0.0
        %1266 = vmatpush1.msra.mxu0 0.0
        %1267 = vmatprep.subr.mxu0 0.0
        %1268 = vmatpush1.msra.mxu0 0.0
        %1269 = vmatprep.subr.mxu0 0.0
        %1270 = vmatpush1.msra.mxu0 0.0
        %1271 = vmatprep.subr.mxu0 0.0
        %1272 = vmatpush1.msra.mxu0 0.0
        %1273 = vmatprep.subr.mxu0 0.0
        %1274 = vmatpush1.msra.mxu0 0.0
        %1275 = vmatprep.subr.mxu0 0.0
        %1276 = vmatpush1.msra.mxu0 0.0
        %1277 = vmatprep.subr.mxu0 0.0
        %1278 = vmatpush1.msra.mxu0 0.0
        %1279 = vmatprep.subr.mxu0 0.0
        %1280 = vmatpush1.msra.mxu0 0.0
        %1281 = vmatprep.subr.mxu0 0.0
        %1282 = vmatpush1.msra.mxu0 0.0
        %1283 = vmatprep.subr.mxu0 0.0
        %1284 = vmatpush1.msra.mxu0 0.0
        %1285 = vmatprep.subr.mxu0 0.0
        %1286 = vmatpush1.msra.mxu0 0.0
        %1287 = vmatprep.subr.mxu0 0.0
        %1288 = vmatpush1.msra.mxu0 0.0
        %1289 = vmatprep.subr.mxu0 0.0
        %1290 = vmatpush1.msra.mxu0 0.0
        %1291 = vmatprep.subr.mxu0 0.0
        %1292 = vmatpush1.msra.mxu0 0.0
        %1293 = vmatprep.subr.mxu0 0.0
        %1294 = vmatpush1.msra.mxu0 0.0
        %1295 = vmatprep.subr.mxu0 0.0
        %1296 = vmatpush1.msra.mxu0 0.0
        %1297 = vmatprep.subr.mxu0 0.0
        %1298 = vmatpush1.msra.mxu0 0.0
        %1299 = vmatprep.mubr.f32.mxu0 0.0
        %1300 = vmatmul.mubr.f32.gmra.mrb[0].mxu0 %v1229
        %v1301 = vpop.f32.mrb[0].mxu0
        %v1302 = vadd.f32 0.0, %v1301
        %v1303 = vpop.f32.mrb[0].mxu0
        %v1304 = vadd.f32 0.0, %v1303
        %1305 = vdwg.mxu0
        %v1306 = vadd.f32 %v1215, %v1302
        %v1307 = vadd.f32 %v1216, %v1304
        %v1308 = vadd.f32 %v1306, %v644
        %v1309 = vadd.f32 %v1307, %v644
        %v1312 = vcombine.low %v1308, %v1309
        %s1314 = scalar_lea.vmem %s163, 16 [#allocation3]
        %1315 = vst [vmem:[%s1314] sm:$0xff] %v1312
        %s1316 = scalar_lea.vmem %s1, 48
        %v1317 = vld [vmem:[%s1316] sm:$0xf]
        %s1318 = scalar_lea.vmem %s1, 52
        %v1319 = vld [vmem:[%s1318] sm:$0xf]
        %v1321 = vsel %vm316, %v1319, 0
        %1323 = vmatprep.subr.mxu0 %v898
        %1324 = vmatpush1.msra.mxu0 %v895
        %1325 = vmatprep.subr.mxu0 0.0
        %1326 = vmatpush1.msra.mxu0 0.0
        %1327 = vmatprep.subr.mxu0 0.0
        %1328 = vmatpush1.msra.mxu0 0.0
        %1329 = vmatprep.subr.mxu0 0.0
        %1330 = vmatpush1.msra.mxu0 0.0
        %1331 = vmatprep.subr.mxu0 0.0
        %1332 = vmatpush1.msra.mxu0 0.0
        %1333 = vmatprep.subr.mxu0 0.0
        %1334 = vmatpush1.msra.mxu0 0.0
        %1335 = vmatprep.subr.mxu0 0.0
        %1336 = vmatpush1.msra.mxu0 0.0
        %1337 = vmatprep.subr.mxu0 0.0
        %1338 = vmatpush1.msra.mxu0 0.0
        %1339 = vmatprep.subr.mxu0 0.0
        %1340 = vmatpush1.msra.mxu0 0.0
        %1341 = vmatprep.subr.mxu0 0.0
        %1342 = vmatpush1.msra.mxu0 0.0
        %1343 = vmatprep.subr.mxu0 0.0
        %1344 = vmatpush1.msra.mxu0 0.0
        %1345 = vmatprep.subr.mxu0 0.0
        %1346 = vmatpush1.msra.mxu0 0.0
        %1347 = vmatprep.subr.mxu0 0.0
        %1348 = vmatpush1.msra.mxu0 0.0
        %1349 = vmatprep.subr.mxu0 0.0
        %1350 = vmatpush1.msra.mxu0 0.0
        %1351 = vmatprep.subr.mxu0 0.0
        %1352 = vmatpush1.msra.mxu0 0.0
        %1353 = vmatprep.subr.mxu0 0.0
        %1354 = vmatpush1.msra.mxu0 0.0
        %1355 = vmatprep.subr.mxu0 0.0
        %1356 = vmatpush1.msra.mxu0 0.0
        %1357 = vmatprep.subr.mxu0 0.0
        %1358 = vmatpush1.msra.mxu0 0.0
        %1359 = vmatprep.subr.mxu0 0.0
        %1360 = vmatpush1.msra.mxu0 0.0
        %1361 = vmatprep.subr.mxu0 0.0
        %1362 = vmatpush1.msra.mxu0 0.0
        %1363 = vmatprep.subr.mxu0 0.0
        %1364 = vmatpush1.msra.mxu0 0.0
        %1365 = vmatprep.subr.mxu0 0.0
        %1366 = vmatpush1.msra.mxu0 0.0
        %1367 = vmatprep.subr.mxu0 0.0
        %1368 = vmatpush1.msra.mxu0 0.0
        %1369 = vmatprep.subr.mxu0 0.0
        %1370 = vmatpush1.msra.mxu0 0.0
        %1371 = vmatprep.subr.mxu0 0.0
        %1372 = vmatpush1.msra.mxu0 0.0
        %1373 = vmatprep.subr.mxu0 0.0
        %1374 = vmatpush1.msra.mxu0 0.0
        %1375 = vmatprep.subr.mxu0 0.0
        %1376 = vmatpush1.msra.mxu0 0.0
        %1377 = vmatprep.subr.mxu0 0.0
        %1378 = vmatpush1.msra.mxu0 0.0
        %1379 = vmatprep.subr.mxu0 0.0
        %1380 = vmatpush1.msra.mxu0 0.0
        %1381 = vmatprep.subr.mxu0 0.0
        %1382 = vmatpush1.msra.mxu0 0.0
        %1383 = vmatprep.subr.mxu0 0.0
        %1384 = vmatpush1.msra.mxu0 0.0
        %1385 = vmatprep.subr.mxu0 0.0
        %1386 = vmatpush1.msra.mxu0 0.0
        %1387 = vmatprep.mubr.f32.mxu0 0.0
        %1388 = vmatmul.mubr.f32.gmra.mrb[0].mxu0 %v1321
        %v1389 = vpop.f32.mrb[0].mxu0
        %v1390 = vadd.f32 0.0, %v1389
        %v1391 = vpop.f32.mrb[0].mxu0
        %v1392 = vadd.f32 0.0, %v1391
        %1393 = vdwg.mxu0
        %v1395 = vsel %vm316, %v1317, 0
        %1397 = vmatprep.subr.mxu0 %v566
        %1398 = vmatpush1.msra.mxu0 %v564
        %1399 = vmatprep.subr.mxu0 0.0
        %1400 = vmatpush1.msra.mxu0 0.0
        %1401 = vmatprep.subr.mxu0 0.0
        %1402 = vmatpush1.msra.mxu0 0.0
        %1403 = vmatprep.subr.mxu0 0.0
        %1404 = vmatpush1.msra.mxu0 0.0
        %1405 = vmatprep.subr.mxu0 0.0
        %1406 = vmatpush1.msra.mxu0 0.0
        %1407 = vmatprep.subr.mxu0 0.0
        %1408 = vmatpush1.msra.mxu0 0.0
        %1409 = vmatprep.subr.mxu0 0.0
        %1410 = vmatpush1.msra.mxu0 0.0
        %1411 = vmatprep.subr.mxu0 0.0
        %1412 = vmatpush1.msra.mxu0 0.0
        %1413 = vmatprep.subr.mxu0 0.0
        %1414 = vmatpush1.msra.mxu0 0.0
        %1415 = vmatprep.subr.mxu0 0.0
        %1416 = vmatpush1.msra.mxu0 0.0
        %1417 = vmatprep.subr.mxu0 0.0
        %1418 = vmatpush1.msra.mxu0 0.0
        %1419 = vmatprep.subr.mxu0 0.0
        %1420 = vmatpush1.msra.mxu0 0.0
        %1421 = vmatprep.subr.mxu0 0.0
        %1422 = vmatpush1.msra.mxu0 0.0
        %1423 = vmatprep.subr.mxu0 0.0
        %1424 = vmatpush1.msra.mxu0 0.0
        %1425 = vmatprep.subr.mxu0 0.0
        %1426 = vmatpush1.msra.mxu0 0.0
        %1427 = vmatprep.subr.mxu0 0.0
        %1428 = vmatpush1.msra.mxu0 0.0
        %1429 = vmatprep.subr.mxu0 0.0
        %1430 = vmatpush1.msra.mxu0 0.0
        %1431 = vmatprep.subr.mxu0 0.0
        %1432 = vmatpush1.msra.mxu0 0.0
        %1433 = vmatprep.subr.mxu0 0.0
        %1434 = vmatpush1.msra.mxu0 0.0
        %1435 = vmatprep.subr.mxu0 0.0
        %1436 = vmatpush1.msra.mxu0 0.0
        %1437 = vmatprep.subr.mxu0 0.0
        %1438 = vmatpush1.msra.mxu0 0.0
        %1439 = vmatprep.subr.mxu0 0.0
        %1440 = vmatpush1.msra.mxu0 0.0
        %1441 = vmatprep.subr.mxu0 0.0
        %1442 = vmatpush1.msra.mxu0 0.0
        %1443 = vmatprep.subr.mxu0 0.0
        %1444 = vmatpush1.msra.mxu0 0.0
        %1445 = vmatprep.subr.mxu0 0.0
        %1446 = vmatpush1.msra.mxu0 0.0
        %1447 = vmatprep.subr.mxu0 0.0
        %1448 = vmatpush1.msra.mxu0 0.0
        %1449 = vmatprep.subr.mxu0 0.0
        %1450 = vmatpush1.msra.mxu0 0.0
        %1451 = vmatprep.subr.mxu0 0.0
        %1452 = vmatpush1.msra.mxu0 0.0
        %1453 = vmatprep.subr.mxu0 0.0
        %1454 = vmatpush1.msra.mxu0 0.0
        %1455 = vmatprep.subr.mxu0 0.0
        %1456 = vmatpush1.msra.mxu0 0.0
        %1457 = vmatprep.subr.mxu0 0.0
        %1458 = vmatpush1.msra.mxu0 0.0
        %1459 = vmatprep.subr.mxu0 0.0
        %1460 = vmatpush1.msra.mxu0 0.0
        %1461 = vmatprep.mubr.f32.mxu0 0.0
        %1462 = vmatmul.mubr.f32.gmra.mrb[0].mxu0 %v1395
        %v1463 = vpop.f32.mrb[0].mxu0
        %v1464 = vadd.f32 %v1390, %v1463
        %v1465 = vpop.f32.mrb[0].mxu0
        %v1466 = vadd.f32 %v1392, %v1465
        %1467 = vdwg.mxu0
        %s1468 = scalar_lea.vmem %s1, 56
        %v1469 = vld [vmem:[%s1468] sm:$0xf]
        %v1471 = vsel %vm316, %v1469, 0
        %1473 = vmatprep.subr.mxu0 %v1233
        %1474 = vmatpush1.msra.mxu0 %v1231
        %1475 = vmatprep.subr.mxu0 0.0
        %1476 = vmatpush1.msra.mxu0 0.0
        %1477 = vmatprep.subr.mxu0 0.0
        %1478 = vmatpush1.msra.mxu0 0.0
        %1479 = vmatprep.subr.mxu0 0.0
        %1480 = vmatpush1.msra.mxu0 0.0
        %1481 = vmatprep.subr.mxu0 0.0
        %1482 = vmatpush1.msra.mxu0 0.0
        %1483 = vmatprep.subr.mxu0 0.0
        %1484 = vmatpush1.msra.mxu0 0.0
        %1485 = vmatprep.subr.mxu0 0.0
        %1486 = vmatpush1.msra.mxu0 0.0
        %1487 = vmatprep.subr.mxu0 0.0
        %1488 = vmatpush1.msra.mxu0 0.0
        %1489 = vmatprep.subr.mxu0 0.0
        %1490 = vmatpush1.msra.mxu0 0.0
        %1491 = vmatprep.subr.mxu0 0.0
        %1492 = vmatpush1.msra.mxu0 0.0
        %1493 = vmatprep.subr.mxu0 0.0
        %1494 = vmatpush1.msra.mxu0 0.0
        %1495 = vmatprep.subr.mxu0 0.0
        %1496 = vmatpush1.msra.mxu0 0.0
        %1497 = vmatprep.subr.mxu0 0.0
        %1498 = vmatpush1.msra.mxu0 0.0
        %1499 = vmatprep.subr.mxu0 0.0
        %1500 = vmatpush1.msra.mxu0 0.0
        %1501 = vmatprep.subr.mxu0 0.0
        %1502 = vmatpush1.msra.mxu0 0.0
        %1503 = vmatprep.subr.mxu0 0.0
        %1504 = vmatpush1.msra.mxu0 0.0
        %1505 = vmatprep.subr.mxu0 0.0
        %1506 = vmatpush1.msra.mxu0 0.0
        %1507 = vmatprep.subr.mxu0 0.0
        %1508 = vmatpush1.msra.mxu0 0.0
        %1509 = vmatprep.subr.mxu0 0.0
        %1510 = vmatpush1.msra.mxu0 0.0
        %1511 = vmatprep.subr.mxu0 0.0
        %1512 = vmatpush1.msra.mxu0 0.0
        %1513 = vmatprep.subr.mxu0 0.0
        %1514 = vmatpush1.msra.mxu0 0.0
        %1515 = vmatprep.subr.mxu0 0.0
        %1516 = vmatpush1.msra.mxu0 0.0
        %1517 = vmatprep.subr.mxu0 0.0
        %1518 = vmatpush1.msra.mxu0 0.0
        %1519 = vmatprep.subr.mxu0 0.0
        %1520 = vmatpush1.msra.mxu0 0.0
        %1521 = vmatprep.subr.mxu0 0.0
        %1522 = vmatpush1.msra.mxu0 0.0
        %1523 = vmatprep.subr.mxu0 0.0
        %1524 = vmatpush1.msra.mxu0 0.0
        %1525 = vmatprep.subr.mxu0 0.0
        %1526 = vmatpush1.msra.mxu0 0.0
        %1527 = vmatprep.subr.mxu0 0.0
        %1528 = vmatpush1.msra.mxu0 0.0
        %1529 = vmatprep.subr.mxu0 0.0
        %1530 = vmatpush1.msra.mxu0 0.0
        %1531 = vmatprep.subr.mxu0 0.0
        %1532 = vmatpush1.msra.mxu0 0.0
        %1533 = vmatprep.subr.mxu0 0.0
        %1534 = vmatpush1.msra.mxu0 0.0
        %1535 = vmatprep.subr.mxu0 0.0
        %1536 = vmatpush1.msra.mxu0 0.0
        %1537 = vmatprep.mubr.f32.mxu0 0.0
        %1538 = vmatmul.mubr.f32.gmra.mrb[0].mxu0 %v1471
        %v1539 = vpop.f32.mrb[0].mxu0
        %v1540 = vadd.f32 0.0, %v1539
        %v1541 = vpop.f32.mrb[0].mxu0
        %v1542 = vadd.f32 0.0, %v1541
        %1543 = vdwg.mxu0
        %v1544 = vadd.f32 %v1464, %v1540
        %v1545 = vadd.f32 %v1466, %v1542
        %s1546 = scalar_lea.vmem %s1, 60
        %v1547 = vld [vmem:[%s1546] sm:$0xf]
        %v1549 = vsel %vm316, %v1547, 0
        %v1552 = vsel %vm170, %v301, 0
        %v1555 = vsel %vm170, %v302, 0
        %1557 = vmatprep.subr.mxu0 %v1555
        %1558 = vmatpush1.msra.mxu0 %v1552
        %1559 = vmatprep.subr.mxu0 0.0
        %1560 = vmatpush1.msra.mxu0 0.0
        %1561 = vmatprep.subr.mxu0 0.0
        %1562 = vmatpush1.msra.mxu0 0.0
        %1563 = vmatprep.subr.mxu0 0.0
        %1564 = vmatpush1.msra.mxu0 0.0
        %1565 = vmatprep.subr.mxu0 0.0
        %1566 = vmatpush1.msra.mxu0 0.0
        %1567 = vmatprep.subr.mxu0 0.0
        %1568 = vmatpush1.msra.mxu0 0.0
        %1569 = vmatprep.subr.mxu0 0.0
        %1570 = vmatpush1.msra.mxu0 0.0
        %1571 = vmatprep.subr.mxu0 0.0
        %1572 = vmatpush1.msra.mxu0 0.0
        %1573 = vmatprep.subr.mxu0 0.0
        %1574 = vmatpush1.msra.mxu0 0.0
        %1575 = vmatprep.subr.mxu0 0.0
        %1576 = vmatpush1.msra.mxu0 0.0
        %1577 = vmatprep.subr.mxu0 0.0
        %1578 = vmatpush1.msra.mxu0 0.0
        %1579 = vmatprep.subr.mxu0 0.0
        %1580 = vmatpush1.msra.mxu0 0.0
        %1581 = vmatprep.subr.mxu0 0.0
        %1582 = vmatpush1.msra.mxu0 0.0
        %1583 = vmatprep.subr.mxu0 0.0
        %1584 = vmatpush1.msra.mxu0 0.0
        %1585 = vmatprep.subr.mxu0 0.0
        %1586 = vmatpush1.msra.mxu0 0.0
        %1587 = vmatprep.subr.mxu0 0.0
        %1588 = vmatpush1.msra.mxu0 0.0
        %1589 = vmatprep.subr.mxu0 0.0
        %1590 = vmatpush1.msra.mxu0 0.0
        %1591 = vmatprep.subr.mxu0 0.0
        %1592 = vmatpush1.msra.mxu0 0.0
        %1593 = vmatprep.subr.mxu0 0.0
        %1594 = vmatpush1.msra.mxu0 0.0
        %1595 = vmatprep.subr.mxu0 0.0
        %1596 = vmatpush1.msra.mxu0 0.0
        %1597 = vmatprep.subr.mxu0 0.0
        %1598 = vmatpush1.msra.mxu0 0.0
        %1599 = vmatprep.subr.mxu0 0.0
        %1600 = vmatpush1.msra.mxu0 0.0
        %1601 = vmatprep.subr.mxu0 0.0
        %1602 = vmatpush1.msra.mxu0 0.0
        %1603 = vmatprep.subr.mxu0 0.0
        %1604 = vmatpush1.msra.mxu0 0.0
        %1605 = vmatprep.subr.mxu0 0.0
        %1606 = vmatpush1.msra.mxu0 0.0
        %1607 = vmatprep.subr.mxu0 0.0
        %1608 = vmatpush1.msra.mxu0 0.0
        %1609 = vmatprep.subr.mxu0 0.0
        %1610 = vmatpush1.msra.mxu0 0.0
        %1611 = vmatprep.subr.mxu0 0.0
        %1612 = vmatpush1.msra.mxu0 0.0
        %1613 = vmatprep.subr.mxu0 0.0
        %1614 = vmatpush1.msra.mxu0 0.0
        %1615 = vmatprep.subr.mxu0 0.0
        %1616 = vmatpush1.msra.mxu0 0.0
        %1617 = vmatprep.subr.mxu0 0.0
        %1618 = vmatpush1.msra.mxu0 0.0
        %1619 = vmatprep.subr.mxu0 0.0
        %1620 = vmatpush1.msra.mxu0 0.0
        %1621 = vmatprep.mubr.f32.mxu0 0.0
        %1622 = vmatmul.mubr.f32.gmra.mrb[0].mxu0 %v1549
        %v1623 = vpop.f32.mrb[0].mxu0
        %v1624 = vadd.f32 0.0, %v1623
        %v1625 = vpop.f32.mrb[0].mxu0
        %v1626 = vadd.f32 0.0, %v1625
        %1627 = vdwg.mxu0
        %v1628 = vadd.f32 %v1544, %v1624
        %v1629 = vadd.f32 %v1545, %v1626
        %v1630 = vadd.f32 %v1628, %v644
        %v1631 = vadd.f32 %v1629, %v644
        %v1634 = vcombine.low %v1630, %v1631
        %s1636 = scalar_lea.vmem %s163, 24 [#allocation3]
        %1637 = vst [vmem:[%s1636] sm:$0xff] %v1634
        %s1638 = sand.u32 %s93, 1
        %s1639 = scalar_lea.sflag [#allocation4], %s1638
        %s1640 = sand.u32 %s93, 1
        %s1641 = smul.addr %s1640, 32
        %s1642 = scalar_lea.vmem [#allocation3], %s1641
        // Predicated region
        $region33: #{tpu_custom_call.1} parent=31 // pred_check
          %p1643 = pneg %p103
        $region34: #{tpu_custom_call.1} parent=31 // pred_check_branch
          %1645 = sbr.rel (%p1643) target = $region36
        $region35: #{tpu_custom_call.1} parent=31 // pred_region
          %s1647 = ssub.s32 512, 512
          %1648 = vsyncadd %s1639, %s1647
          %s1649 = smul.addr %s17, 8
          %s1650 = smul.addr %s1649, 64
          %s1651 = scalar_lea.hbm %s3, %s1650
          %s1652 = sshll.u32 %s1642, 4
          %s1653 = int_to_ptr.vmem [resolvable:$true] %s1652
          %1658 = dma.vmem_to_hbm [thread:$0]  %s1653, 512, %s1651, %s1639, 128, 128, 8
        $region36: #{tpu_custom_call.1} parent=31 // pred_fallthru
          _
      $region32: #{tpu_custom_call.1} parent=5 // pred_fallthru
        _
      %p1659 = scmp.le.s32.totalorder 2, %s12
      // Predicated region
      $region37: #{tpu_custom_call.1} parent=5 // pred_check
        %p1660 = pneg %p1659
      $region38: #{tpu_custom_call.1} parent=5 // pred_check_branch
        %1662 = sbr.rel (%p1660) target = $region40
      $region39: #{tpu_custom_call.1} parent=5 // pred_region
        %s1663 = ssub.s32 %s12, 2
        // Predicated region
        $region41: #{tpu_custom_call.1} parent=39 // pred_check
          %p1664 = pneg %p109
        $region42: #{tpu_custom_call.1} parent=39 // pred_check_branch
          %1666 = sbr.rel (%p1664) target = $region44
        $region43: #{tpu_custom_call.1} parent=39 // pred_region
          %s1667 = sand.u32 %s94, 1
          %s1668 = scalar_lea.sflag [#allocation4], %s1667
          %s1669 = sand.u32 %s94, 1
          %s1670 = smul.addr %s1669, 32
          %s1671 = scalar_lea.vmem [#allocation3], %s1670
          %1672 = dma.done %s1668, 512
        $region44: #{tpu_custom_call.1} parent=39 // pred_fallthru
          _
      $region40: #{tpu_custom_call.1} parent=5 // pred_fallthru
        _
    $region6: #{tpu_custom_call.1} parent=1 // loop_footer
      %s16 = sadd.s32 1, %s12
    $region7: #{tpu_custom_call.1} parent=1 // loop_footer_branch
      %11 = sbr.rel target = $region3
    $region8: #{tpu_custom_call.1} parent=1 // loop_exit
      _
    %1673 = vsyncpa [#allocation4], 1
    %s1674 = scalar_lea.sflag [#allocation4], 1
    %1675 = vsyncpa %s1674, 1

</llo_original>
